<compile_context>
chip_gen: v6e
topology: v6e:2x2x1
jax: 0.10.0
libtpu: 0.0.40
codegen_flags: <defaults>
</compile_context>

<pallas_src>
import jax
import jax.numpy as jnp
from jax import lax
from jax.experimental import pallas as pl
from jax.experimental.pallas import tpu as pltpu


def _bilinear_matrix(in_size: int, out_size: int) -> jnp.ndarray:
    """Interpolation matrix matching F.interpolate(mode='bilinear', align_corners=True)."""
    if out_size == 1:
        src = jnp.zeros((1,), jnp.float32)
    else:
        src = jnp.arange(out_size, dtype=jnp.float32) * (in_size - 1) / (out_size - 1)
    lo = jnp.clip(jnp.floor(src).astype(jnp.int32), 0, in_size - 1)
    hi = jnp.clip(lo + 1, 0, in_size - 1)
    frac = src - lo.astype(jnp.float32)
    rows = jnp.arange(out_size)
    a = jnp.zeros((out_size, in_size), jnp.float32)
    a = a.at[rows, lo].add(1.0 - frac)
    a = a.at[rows, hi].add(frac)
    return a


def make_deconv(w, b, *, padding: int, in_shape):
    """Build a jitted Deconv forward for fixed weights / input shape."""
    N, C_in, H, W = in_shape
    C_out, c_in_w, KH, KW = w.shape
    assert c_in_w == C_in
    H2, W2 = 2 * H, 2 * W
    H2p, W2p = H2 + 2 * padding, W2 + 2 * padding
    OH, OW = H2p - KH + 1, W2p - KW + 1
    CW = C_in * W               # stage-1 lane width
    KCW = KH * CW               # fused contraction depth (192 for the test)
    COW = C_out * OW            # output lane width

    f32 = jnp.float32
    HIGHEST = lax.Precision.HIGHEST

    # ---- image grouping: pack as many images per grid step as keeps the ----
    # ---- matmul M dimension (G*OH) <= 256 MXU rows.                      ----
    G = 1
    for d in range(1, N + 1):
        if N % d == 0 and d * OH <= 256:
            G = d
    num_groups = N // G

    # ---- host-side structured operator matrices (built ONCE here) ----
    # H upsample + zero padding rows, block-diagonal over the image group.
    a_h = jnp.pad(_bilinear_matrix(H, H2), ((padding, padding), (0, 0)))      # (H2p, H)
    a_block = jnp.kron(jnp.eye(G, dtype=f32), a_h)                            # (G*H2p, G*H)
    # W upsample + zero padding cols, block-diagonal over input channels.
    a_w_t = jnp.pad(_bilinear_matrix(W, W2), ((padding, padding), (0, 0))).T  # (W, W2p)
    awb = jnp.kron(jnp.eye(C_in, dtype=f32), a_w_t)                           # (CW, C_in*W2p)
    # Conv-as-matmul per kernel row kh:
    #   mk[kh][(c, wcol), (co, ow)] = w[co, c, kh, wcol - ow]  (0 <= wcol-ow < KW)
    shift = jnp.stack([jnp.eye(W2p, OW, k=-kw, dtype=f32) for kw in range(KW)])  # (KW, W2p, OW)
    mk = jnp.einsum('ocek,kwq->ecwoq', w.astype(f32), shift)                  # (KH, C_in, W2p, C_out, OW)
    mk = mk.reshape(KH, C_in * W2p, COW)
    # Fold the W-upsample into the conv matrices (exact: row slicing commutes
    # with right multiplication), then stack over kh for one K=KCW matmul.
    mk_fused = jnp.einsum('ij,kjl->kil', awb, mk)                             # (KH, CW, COW)
    m_cat = mk_fused.reshape(KCW, COW)                                        # (KCW, COW)
    bias_row = jnp.repeat(b.astype(f32), OW).reshape(1, COW)

    def kernel(x_ref, ab_ref, mcat_ref, bias_ref, o_ref):
        # Stage 1: H-upsample + padding for the whole image group, one matmul.
        r = jnp.dot(ab_ref[...], x_ref[...],
                    precision=HIGHEST, preferred_element_type=f32)   # (G*H2p, CW)
        # Build the fused-conv LHS: per image, concat the KH row-shifted
        # windows along lanes, then stack images along M.
        rows = []
        for gg in range(G):
            base = gg * H2p
            rows.append(jnp.concatenate(
                [r[base + kh:base + kh + OH, :] for kh in range(KH)], axis=1))
        lhs = jnp.concatenate(rows, axis=0)                           # (G*OH, KCW)
        # Stage 2: W-upsample + KxK conv fused into ONE K=KCW MXU matmul.
        acc = jnp.dot(lhs, mcat_ref[...],
                      precision=HIGHEST, preferred_element_type=f32)  # (G*OH, COW)
        o_ref[...] = (acc + bias_ref[...]).astype(o_ref.dtype)

    call = pl.pallas_call(
        kernel,
        out_shape=jax.ShapeDtypeStruct((N * OH, COW), f32),
        grid=(num_groups,),
        in_specs=[
            pl.BlockSpec((G * H, CW), lambda g: (g, 0)),       # per-group input rows
            pl.BlockSpec((G * H2p, G * H), lambda g: (0, 0)),  # constant operators
            pl.BlockSpec((KCW, COW), lambda g: (0, 0)),
            pl.BlockSpec((1, COW), lambda g: (0, 0)),
        ],
        out_specs=pl.BlockSpec((G * OH, COW), lambda g: (g, 0)),
        compiler_params=pltpu.CompilerParams(dimension_semantics=("parallel",)),
    )

    @jax.jit
    def apply(x):
        # Channel-batched, image-row-stacked input layout: (N*H, C_in*W).
        xr = jnp.transpose(x, (0, 2, 1, 3)).reshape(N * H, CW).astype(f32)
        out2d = call(xr, a_block, m_cat, bias_row)                    # (N*OH, C_out*OW)
        return out2d.reshape(N, OH, C_out, OW).transpose(0, 2, 1, 3)  # NCHW

    return apply


def deconv_pallas(x, w, b, *, padding: int):
    return make_deconv(w, b, padding=padding, in_shape=x.shape)(x)


def deconv_reference(x, w, b, *, padding: int):
    """Pure-JAX reference: bilinear 2x upsample (align_corners=True) + Conv2d."""
    N, C_in, H, W = x.shape
    a_h = _bilinear_matrix(H, 2 * H)
    a_w = _bilinear_matrix(W, 2 * W)
    up = jnp.einsum('ph,nchw,qw->ncpq', a_h, x, a_w,
                    precision=lax.Precision.HIGHEST)
    out = lax.conv_general_dilated(
        up, w, window_strides=(1, 1),
        padding=[(padding, padding), (padding, padding)],
        dimension_numbers=('NCHW', 'OIHW', 'NCHW'),
        precision=lax.Precision.HIGHEST)
    return out + b[None, :, None, None]


if __name__ == "__main__":
    key = jax.random.PRNGKey(0)
    k1, k2, k3 = jax.random.split(key, 3)

    # Deconv(in_channels=4, out_channels=6, kernel_size=3, padding=1)
    N, C_in, C_out, H, W = 2, 4, 6, 16, 16
    KH = KW = 3
    padding = 1

    x = jax.random.normal(k1, (N, C_in, H, W), jnp.float32)
    fan_in = C_in * KH * KW
    bound = 1.0 / (fan_in ** 0.5)
    w = jax.random.uniform(k2, (C_out, C_in, KH, KW), jnp.float32, -bound, bound)
    b = jax.random.uniform(k3, (C_out,), jnp.float32, -bound, bound)

    deconv = make_deconv(w, b, padding=padding, in_shape=x.shape)
    out = jax.block_until_ready(deconv(x))

    ref = deconv_reference(x, w, b, padding=padding)
    assert out.shape == (N, C_out, 2 * H + 2 * padding - KH + 1,
                         2 * W + 2 * padding - KW + 1), out.shape
    max_err = float(jnp.max(jnp.abs(out - ref)))
    assert jnp.allclose(out, ref, atol=1e-4, rtol=1e-4), f"max abs err = {max_err}"

    print("KERNEL_OK")
</pallas_src>

<mosaic_0001>
module attributes {stable_mosaic.version = 11 : i64} {
  func.func @kernel(%arg0: i32, %arg1: memref<32x64xf32, #tpu.memory_space<vmem>>, %arg2: memref<68x32xf32, #tpu.memory_space<vmem>>, %arg3: memref<192x192xf32, #tpu.memory_space<vmem>>, %arg4: memref<1x192xf32, #tpu.memory_space<vmem>>, %arg5: memref<64x192xf32, #tpu.memory_space<vmem>>) attributes {dimension_semantics = [#tpu.dimension_semantics<parallel>], iteration_bounds = array<i64: 1>, scalar_prefetch = 0 : i64, scratch_operands = 0 : i64, tpu.core_type = #tpu.core_type<tc>, window_params = [{transform_indices = @transform_0, window_bounds = array<i64: 32, 64>}, {pipeline_mode = #tpu.pipeline_mode<synchronous>, transform_indices = @transform_1, window_bounds = array<i64: 68, 32>}, {pipeline_mode = #tpu.pipeline_mode<synchronous>, transform_indices = @transform_2, window_bounds = array<i64: 192, 192>}, {pipeline_mode = #tpu.pipeline_mode<synchronous>, transform_indices = @transform_3, window_bounds = array<i64: 1, 192>}, {transform_indices = @transform_4, window_bounds = array<i64: 64, 192>}]} {
    %c0 = arith.constant 0 : index
    %c0_0 = arith.constant 0 : index
    %0 = vector.load %arg2[%c0, %c0_0] : memref<68x32xf32, #tpu.memory_space<vmem>>, vector<68x32xf32>
    %c0_1 = arith.constant 0 : index
    %c0_2 = arith.constant 0 : index
    %1 = vector.load %arg1[%c0_1, %c0_2] : memref<32x64xf32, #tpu.memory_space<vmem>>, vector<32x64xf32>
    %cst = arith.constant dense<0.000000e+00> : vector<68x64xf32>
    %2 = tpu.matmul %0, %1, %cst {dimension_numbers = #tpu.dot_dimension_numbers<[1], [0], [0], [1], [0, 0, 1, 1], [], []>, precision = #tpu.contract_precision<fp32>} : vector<68x32xf32>, vector<32x64xf32>, vector<68x64xf32> -> vector<68x64xf32>
    %3 = vector.extract_strided_slice %2 {offsets = [0, 0], sizes = [32, 64], strides = [1, 1]} : vector<68x64xf32> to vector<32x64xf32>
    %4 = vector.extract_strided_slice %2 {offsets = [1, 0], sizes = [32, 64], strides = [1, 1]} : vector<68x64xf32> to vector<32x64xf32>
    %5 = vector.extract_strided_slice %2 {offsets = [2, 0], sizes = [32, 64], strides = [1, 1]} : vector<68x64xf32> to vector<32x64xf32>
    %6 = tpu.concatenate %3, %4, %5 in 1 : vector<32x64xf32>, vector<32x64xf32>, vector<32x64xf32> -> vector<32x192xf32>
    %7 = vector.extract_strided_slice %2 {offsets = [34, 0], sizes = [32, 64], strides = [1, 1]} : vector<68x64xf32> to vector<32x64xf32>
    %8 = vector.extract_strided_slice %2 {offsets = [35, 0], sizes = [32, 64], strides = [1, 1]} : vector<68x64xf32> to vector<32x64xf32>
    %9 = vector.extract_strided_slice %2 {offsets = [36, 0], sizes = [32, 64], strides = [1, 1]} : vector<68x64xf32> to vector<32x64xf32>
    %10 = tpu.concatenate %7, %8, %9 in 1 : vector<32x64xf32>, vector<32x64xf32>, vector<32x64xf32> -> vector<32x192xf32>
    %11 = tpu.concatenate %6, %10 in 0 : vector<32x192xf32>, vector<32x192xf32> -> vector<64x192xf32>
    %c0_3 = arith.constant 0 : index
    %c0_4 = arith.constant 0 : index
    %12 = vector.load %arg3[%c0_3, %c0_4] : memref<192x192xf32, #tpu.memory_space<vmem>>, vector<192x192xf32>
    %cst_5 = arith.constant dense<0.000000e+00> : vector<64x192xf32>
    %13 = tpu.matmul %11, %12, %cst_5 {dimension_numbers = #tpu.dot_dimension_numbers<[1], [0], [0], [1], [0, 0, 1, 1], [], []>, precision = #tpu.contract_precision<fp32>} : vector<64x192xf32>, vector<192x192xf32>, vector<64x192xf32> -> vector<64x192xf32>
    %c0_6 = arith.constant 0 : index
    %c0_7 = arith.constant 0 : index
    %14 = vector.load %arg4[%c0_6, %c0_7] : memref<1x192xf32, #tpu.memory_space<vmem>>, vector<1x192xf32>
    %15 = vector.broadcast %14 : vector<1x192xf32> to vector<64x192xf32>
    %16 = arith.addf %13, %15 : vector<64x192xf32>
    %c0_8 = arith.constant 0 : index
    %c0_9 = arith.constant 0 : index
    %17 = vector.load %arg5[%c0_8, %c0_9] : memref<64x192xf32, #tpu.memory_space<vmem>>, vector<64x192xf32>
    tpu.vector_store %arg5[%c0_8, %c0_9], %16 {strides = array<i32>} : memref<64x192xf32, #tpu.memory_space<vmem>>, vector<64x192xf32>,
    return
  }
  func.func @transform_0(%arg0: i32) -> (i32, i32) {
    %c0_i32 = arith.constant 0 : i32
    %c0_i32_0 = arith.constant 0 : i32
    return %arg0, %c0_i32 : i32, i32
  }
  func.func @transform_1(%arg0: i32) -> (i32, i32) {
    %c0_i32 = arith.constant 0 : i32
    %c0_i32_0 = arith.constant 0 : i32
    %c0_i32_1 = arith.constant 0 : i32
    return %c0_i32, %c0_i32_0 : i32, i32
  }
  func.func @transform_2(%arg0: i32) -> (i32, i32) {
    %c0_i32 = arith.constant 0 : i32
    %c0_i32_0 = arith.constant 0 : i32
    %c0_i32_1 = arith.constant 0 : i32
    return %c0_i32, %c0_i32_0 : i32, i32
  }
  func.func @transform_3(%arg0: i32) -> (i32, i32) {
    %c0_i32 = arith.constant 0 : i32
    %c0_i32_0 = arith.constant 0 : i32
    %c0_i32_1 = arith.constant 0 : i32
    return %c0_i32, %c0_i32_0 : i32, i32
  }
  func.func @transform_4(%arg0: i32) -> (i32, i32) {
    %c0_i32 = arith.constant 0 : i32
    %c0_i32_0 = arith.constant 0 : i32
    return %arg0, %c0_i32 : i32, i32
  }
}

</mosaic_0001>

<llo_original>
// kernel: apply.1
$region0: #{apply.1}
  #allocation0 [shape = 'u32[]', space=smem, size = 0x4, offset = 0x4, fixed_abs, tag = 'smem constant byte address 0x4 - core index']
  #allocation1 [shape = 'u32[144,128]{1,0:T(1,128)}', space=vmem, size = 0x12000, scoped, tag = 'internal scratch']
  %s0 = inlined_call_operand.vmem [shape: f32[32,64], index: 0, kind: input, shape index: {}]
  %s1 = inlined_call_operand.hbm [shape: f32[68,32], index: 1, kind: input, shape index: {}]
  %s2 = inlined_call_operand.vmem [shape: f32[192,192], index: 2, kind: input, shape index: {}]
  %s3 = inlined_call_operand.vmem [shape: f32[1,192], index: 3, kind: input, shape index: {}]
  %s4 = inlined_call_operand.vmem [shape: f32[64,192], index: 4, kind: output, shape index: {}]
  %s5 = sld [smem:[#allocation0]]
  $region30: #{apply.1} parent=0
    _
  %s7 = ssub.s32 1, %s5
  %s8 = scalar_select 0, %s7, %s5
  $region1: #{apply.1} parent=0
    #allocation2 [shape = 'u8[36864]{0}', space=vmem, size = 0x9000, scoped, tag = 'input window, operand 1, single buffered']
    #allocation3 [shape = 's32[1]{0}', space=sflag, size = 0x4, scoped, tag = 'scoped memory for apply.1']
    %9 = vsyncpa [#allocation3], 0
    // Predicated region
    $region2: #{apply.1} parent=1 // pred_check
      _
    $region3: #{apply.1} parent=1 // pred_check_branch
      %11 = sbr.rel (0) target = $region5
    $region4: #{apply.1} parent=1 // pred_region
      _
    $region5: #{apply.1} parent=1 // pred_fallthru
      _
    // Predicated region
    $region6: #{apply.1} parent=1 // pred_check
      _
    $region7: #{apply.1} parent=1 // pred_check_branch
      %13 = sbr.rel (0) target = $region9
    $region8: #{apply.1} parent=1 // pred_region
      %s15 = ssub.s32 1152, 1152
      %16 = vsyncadd [#allocation3], %s15
      %s17 = sshll.u32 [#allocation2], 4
      %s18 = int_to_ptr.vmem [resolvable:$true] %s17
      %23 = dma.hbm_to_vmem [thread:$0]  %s1, 1152, %s18, [#allocation3], 128, 128, 8
    $region9: #{apply.1} parent=1 // pred_fallthru
      _
    // Predicated region
    $region10: #{apply.1} parent=1 // pred_check
      _
    $region11: #{apply.1} parent=1 // pred_check_branch
      %25 = sbr.rel (0) target = $region13
    $region12: #{apply.1} parent=1 // pred_region
      _
    $region13: #{apply.1} parent=1 // pred_fallthru
      _
    // Predicated region
    $region14: #{apply.1} parent=1 // pred_check
      _
    $region15: #{apply.1} parent=1 // pred_check_branch
      %27 = sbr.rel (0) target = $region17
    $region16: #{apply.1} parent=1 // pred_region
      _
    $region17: #{apply.1} parent=1 // pred_fallthru
      _
    // Predicated region
    $region18: #{apply.1} parent=1 // pred_check
      _
    $region19: #{apply.1} parent=1 // pred_check_branch
      %29 = sbr.rel (0) target = $region21
    $region20: #{apply.1} parent=1 // pred_region
      %30 = dma.done [#allocation3], 1152
    $region21: #{apply.1} parent=1 // pred_fallthru
      _
    %v31 = vld [vmem:[#allocation2] sm:$0xff]
    %v32 = vld [vmem:[#allocation2 + $0x8] sm:$0xff]
    %v33 = vld [vmem:[#allocation2 + $0x10] sm:$0xff]
    %v34 = vld [vmem:[#allocation2 + $0x18] sm:$0xff]
    %v35 = vld [vmem:[#allocation2 + $0x20] sm:$0xff]
    %v36 = vld [vmem:[#allocation2 + $0x28] sm:$0xff]
    %v37 = vld [vmem:[#allocation2 + $0x30] sm:$0xff]
    %v38 = vld [vmem:[#allocation2 + $0x38] sm:$0xff]
    %v39 = vld [vmem:[#allocation2 + $0x40] sm:$0xf]
    %v40 = vld [vmem:[%s0] sm:$0xff]
    %v41 = vld [vmem:[%s0 + $0x8] sm:$0xff]
    %v42 = vld [vmem:[%s0 + $0x10] sm:$0xff]
    %v43 = vld [vmem:[%s0 + $0x18] sm:$0xff]
    %vm44 = vcmask 261120
    %v46 = vsel %vm44, %v31, 0
    %v49 = vsel %vm44, %v32, 0
    %v52 = vsel %vm44, %v33, 0
    %v55 = vsel %vm44, %v34, 0
    %v58 = vsel %vm44, %v35, 0
    %v61 = vsel %vm44, %v36, 0
    %v64 = vsel %vm44, %v37, 0
    %v67 = vsel %vm44, %v38, 0
    %v70 = vsel %vm44, %v39, 0
    %72 = vmatprep.subr.mxu0 0.0
    %73 = vmatpush1.msra.mxu0 0.0
    %74 = vmatprep.subr.mxu0 0.0
    %75 = vmatpush1.msra.mxu0 0.0
    %76 = vmatprep.subr.mxu0 0.0
    %77 = vmatpush1.msra.mxu0 0.0
    %78 = vmatprep.subr.mxu0 0.0
    %79 = vmatpush1.msra.mxu0 0.0
    %80 = vmatprep.subr.mxu0 0.0
    %81 = vmatpush1.msra.mxu0 0.0
    %82 = vmatprep.subr.mxu0 0.0
    %83 = vmatpush1.msra.mxu0 0.0
    %84 = vmatprep.subr.mxu0 0.0
    %85 = vmatpush1.msra.mxu0 0.0
    %86 = vmatprep.subr.mxu0 0.0
    %87 = vmatpush1.msra.mxu0 0.0
    %88 = vmatprep.subr.mxu0 0.0
    %89 = vmatpush1.msra.mxu0 0.0
    %90 = vmatprep.subr.mxu0 0.0
    %91 = vmatpush1.msra.mxu0 0.0
    %92 = vmatprep.subr.mxu0 0.0
    %93 = vmatpush1.msra.mxu0 0.0
    %94 = vmatprep.subr.mxu0 0.0
    %95 = vmatpush1.msra.mxu0 0.0
    %96 = vmatprep.subr.mxu0 0.0
    %v97 = vand.u32 %v43, 4294901760
    %98 = vmatpush1.msra.mxu0 %v97
    %99 = vmatprep.subr.mxu0 0.0
    %v100 = vand.u32 %v42, 4294901760
    %101 = vmatpush1.msra.mxu0 %v100
    %102 = vmatprep.subr.mxu0 0.0
    %v103 = vand.u32 %v41, 4294901760
    %104 = vmatpush1.msra.mxu0 %v103
    %105 = vmatprep.subr.mxu0 0.0
    %v106 = vand.u32 %v40, 4294901760
    %107 = vmatpush1.msra.mxu0 %v106
    %108 = vmatprep.subr.mxu0 0.0
    %109 = vmatpush2.msra.mxu0 0.0
    %110 = vmatprep.subr.mxu0 0.0
    %111 = vmatpush2.msra.mxu0 0.0
    %112 = vmatprep.subr.mxu0 0.0
    %113 = vmatpush2.msra.mxu0 0.0
    %114 = vmatprep.subr.mxu0 0.0
    %115 = vmatpush2.msra.mxu0 0.0
    %116 = vmatprep.subr.mxu0 0.0
    %117 = vmatpush2.msra.mxu0 0.0
    %118 = vmatprep.subr.mxu0 0.0
    %119 = vmatpush2.msra.mxu0 0.0
    %120 = vmatprep.subr.mxu0 0.0
    %121 = vmatpush2.msra.mxu0 0.0
    %122 = vmatprep.subr.mxu0 0.0
    %123 = vmatpush2.msra.mxu0 0.0
    %124 = vmatprep.subr.mxu0 0.0
    %125 = vmatpush2.msra.mxu0 0.0
    %126 = vmatprep.subr.mxu0 0.0
    %127 = vmatpush2.msra.mxu0 0.0
    %128 = vmatprep.subr.mxu0 0.0
    %129 = vmatpush2.msra.mxu0 0.0
    %130 = vmatprep.subr.mxu0 0.0
    %131 = vmatpush2.msra.mxu0 0.0
    %132 = vmatprep.subr.mxu0 0.0
    %133 = vmatpush2.msra.mxu0 0.0
    %134 = vmatprep.subr.mxu0 0.0
    %135 = vmatpush2.msra.mxu0 0.0
    %136 = vmatprep.subr.mxu0 0.0
    %137 = vmatpush2.msra.mxu0 0.0
    %138 = vmatprep.subr.mxu0 0.0
    %139 = vmatpush2.msra.mxu0 0.0
    %140 = vmatprep.mubr.f32.mxu0 0.0
    %v141 = vand.u32 %v46, 4294901760
    %v142 = vsub.f32 %v46, %v141
    %v143 = vand.u32 %v142, 4294901760
    %v144 = vsub.f32 %v142, %v143
    %v145 = vand.u32 %v144, 4294901760
    %146 = vmatmul.mubr.f32.gmra.mxu0 %v145
    %v147 = vpop.f32.mrf.mxu0
    %v148 = vadd.f32 0.0, %v147
    %v149 = vpop.f32.mrf.mxu0
    %150 = vmatprep.mubr.f32.mxu0 0.0
    %v151 = vand.u32 %v49, 4294901760
    %v152 = vsub.f32 %v49, %v151
    %v153 = vand.u32 %v152, 4294901760
    %v154 = vsub.f32 %v152, %v153
    %v155 = vand.u32 %v154, 4294901760
    %156 = vmatmul.mubr.f32.gmra.mxu0 %v155
    %v157 = vpop.f32.mrf.mxu0
    %v158 = vadd.f32 0.0, %v157
    %v159 = vpop.f32.mrf.mxu0
    %160 = vmatprep.mubr.f32.mxu0 0.0
    %v161 = vand.u32 %v52, 4294901760
    %v162 = vsub.f32 %v52, %v161
    %v163 = vand.u32 %v162, 4294901760
    %v164 = vsub.f32 %v162, %v163
    %v165 = vand.u32 %v164, 4294901760
    %166 = vmatmul.mubr.f32.gmra.mxu0 %v165
    %v167 = vpop.f32.mrf.mxu0
    %v168 = vadd.f32 0.0, %v167
    %v169 = vpop.f32.mrf.mxu0
    %170 = vmatprep.mubr.f32.mxu0 0.0
    %v171 = vand.u32 %v55, 4294901760
    %v172 = vsub.f32 %v55, %v171
    %v173 = vand.u32 %v172, 4294901760
    %v174 = vsub.f32 %v172, %v173
    %v175 = vand.u32 %v174, 4294901760
    %176 = vmatmul.mubr.f32.gmra.mxu0 %v175
    %v177 = vpop.f32.mrf.mxu0
    %v178 = vadd.f32 0.0, %v177
    %v179 = vpop.f32.mrf.mxu0
    %180 = vmatprep.mubr.f32.mxu0 0.0
    %v181 = vand.u32 %v58, 4294901760
    %v182 = vsub.f32 %v58, %v181
    %v183 = vand.u32 %v182, 4294901760
    %v184 = vsub.f32 %v182, %v183
    %v185 = vand.u32 %v184, 4294901760
    %186 = vmatmul.mubr.f32.gmra.mxu0 %v185
    %v187 = vpop.f32.mrf.mxu0
    %v188 = vadd.f32 0.0, %v187
    %v189 = vpop.f32.mrf.mxu0
    %190 = vmatprep.mubr.f32.mxu0 0.0
    %v191 = vand.u32 %v61, 4294901760
    %v192 = vsub.f32 %v61, %v191
    %v193 = vand.u32 %v192, 4294901760
    %v194 = vsub.f32 %v192, %v193
    %v195 = vand.u32 %v194, 4294901760
    %196 = vmatmul.mubr.f32.gmra.mxu0 %v195
    %v197 = vpop.f32.mrf.mxu0
    %v198 = vadd.f32 0.0, %v197
    %v199 = vpop.f32.mrf.mxu0
    %200 = vmatprep.mubr.f32.mxu0 0.0
    %v201 = vand.u32 %v64, 4294901760
    %v202 = vsub.f32 %v64, %v201
    %v203 = vand.u32 %v202, 4294901760
    %v204 = vsub.f32 %v202, %v203
    %v205 = vand.u32 %v204, 4294901760
    %206 = vmatmul.mubr.f32.gmra.mxu0 %v205
    %v207 = vpop.f32.mrf.mxu0
    %v208 = vadd.f32 0.0, %v207
    %v209 = vpop.f32.mrf.mxu0
    %210 = vmatprep.mubr.f32.mxu0 0.0
    %v211 = vand.u32 %v67, 4294901760
    %v212 = vsub.f32 %v67, %v211
    %v213 = vand.u32 %v212, 4294901760
    %v214 = vsub.f32 %v212, %v213
    %v215 = vand.u32 %v214, 4294901760
    %216 = vmatmul.mubr.f32.gmra.mxu0 %v215
    %v217 = vpop.f32.mrf.mxu0
    %v218 = vadd.f32 0.0, %v217
    %v219 = vpop.f32.mrf.mxu0
    %220 = vmatprep.mubr.f32.mxu0 0.0
    %v221 = vand.u32 %v70, 4294901760
    %v222 = vsub.f32 %v70, %v221
    %v223 = vand.u32 %v222, 4294901760
    %v224 = vsub.f32 %v222, %v223
    %v225 = vand.u32 %v224, 4294901760
    %226 = vmatmul.mubr.f32.gmra.mxu0 %v225
    %v227 = vpop.f32.mrf.mxu0
    %v228 = vadd.f32 0.0, %v227
    %v229 = vpop.f32.mrf.mxu0
    %230 = vdwg.mxu0
    %231 = vmatprep.subr.mxu0 0.0
    %232 = vmatpush1.msra.mxu0 0.0
    %233 = vmatprep.subr.mxu0 0.0
    %234 = vmatpush1.msra.mxu0 0.0
    %235 = vmatprep.subr.mxu0 0.0
    %236 = vmatpush1.msra.mxu0 0.0
    %237 = vmatprep.subr.mxu0 0.0
    %238 = vmatpush1.msra.mxu0 0.0
    %239 = vmatprep.subr.mxu0 0.0
    %240 = vmatpush1.msra.mxu0 0.0
    %241 = vmatprep.subr.mxu0 0.0
    %242 = vmatpush1.msra.mxu0 0.0
    %243 = vmatprep.subr.mxu0 0.0
    %244 = vmatpush1.msra.mxu0 0.0
    %245 = vmatprep.subr.mxu0 0.0
    %246 = vmatpush1.msra.mxu0 0.0
    %247 = vmatprep.subr.mxu0 0.0
    %248 = vmatpush1.msra.mxu0 0.0
    %249 = vmatprep.subr.mxu0 0.0
    %250 = vmatpush1.msra.mxu0 0.0
    %251 = vmatprep.subr.mxu0 0.0
    %252 = vmatpush1.msra.mxu0 0.0
    %253 = vmatprep.subr.mxu0 0.0
    %254 = vmatpush1.msra.mxu0 0.0
    %255 = vmatprep.subr.mxu0 0.0
    %v256 = vand.u32 %v43, 4294901760
    %v257 = vsub.f32 %v43, %v256
    %v258 = vand.u32 %v257, 4294901760
    %v259 = vsub.f32 %v257, %v258
    %v260 = vand.u32 %v259, 4294901760
    %261 = vmatpush1.msra.mxu0 %v260
    %262 = vmatprep.subr.mxu0 0.0
    %v263 = vand.u32 %v42, 4294901760
    %v264 = vsub.f32 %v42, %v263
    %v265 = vand.u32 %v264, 4294901760
    %v266 = vsub.f32 %v264, %v265
    %v267 = vand.u32 %v266, 4294901760
    %268 = vmatpush1.msra.mxu0 %v267
    %269 = vmatprep.subr.mxu0 0.0
    %v270 = vand.u32 %v41, 4294901760
    %v271 = vsub.f32 %v41, %v270
    %v272 = vand.u32 %v271, 4294901760
    %v273 = vsub.f32 %v271, %v272
    %v274 = vand.u32 %v273, 4294901760
    %275 = vmatpush1.msra.mxu0 %v274
    %276 = vmatprep.subr.mxu0 0.0
    %v277 = vand.u32 %v40, 4294901760
    %v278 = vsub.f32 %v40, %v277
    %v279 = vand.u32 %v278, 4294901760
    %v280 = vsub.f32 %v278, %v279
    %v281 = vand.u32 %v280, 4294901760
    %282 = vmatpush1.msra.mxu0 %v281
    %283 = vmatprep.subr.mxu0 0.0
    %284 = vmatpush2.msra.mxu0 0.0
    %285 = vmatprep.subr.mxu0 0.0
    %286 = vmatpush2.msra.mxu0 0.0
    %287 = vmatprep.subr.mxu0 0.0
    %288 = vmatpush2.msra.mxu0 0.0
    %289 = vmatprep.subr.mxu0 0.0
    %290 = vmatpush2.msra.mxu0 0.0
    %291 = vmatprep.subr.mxu0 0.0
    %292 = vmatpush2.msra.mxu0 0.0
    %293 = vmatprep.subr.mxu0 0.0
    %294 = vmatpush2.msra.mxu0 0.0
    %295 = vmatprep.subr.mxu0 0.0
    %296 = vmatpush2.msra.mxu0 0.0
    %297 = vmatprep.subr.mxu0 0.0
    %298 = vmatpush2.msra.mxu0 0.0
    %299 = vmatprep.subr.mxu0 0.0
    %300 = vmatpush2.msra.mxu0 0.0
    %301 = vmatprep.subr.mxu0 0.0
    %302 = vmatpush2.msra.mxu0 0.0
    %303 = vmatprep.subr.mxu0 0.0
    %304 = vmatpush2.msra.mxu0 0.0
    %305 = vmatprep.subr.mxu0 0.0
    %306 = vmatpush2.msra.mxu0 0.0
    %307 = vmatprep.subr.mxu0 0.0
    %308 = vmatpush2.msra.mxu0 0.0
    %309 = vmatprep.subr.mxu0 0.0
    %310 = vmatpush2.msra.mxu0 0.0
    %311 = vmatprep.subr.mxu0 0.0
    %312 = vmatpush2.msra.mxu0 0.0
    %313 = vmatprep.subr.mxu0 0.0
    %314 = vmatpush2.msra.mxu0 0.0
    %315 = vmatprep.mubr.f32.mxu0 0.0
    %v316 = vand.u32 %v46, 4294901760
    %317 = vmatmul.mubr.f32.gmra.mxu0 %v316
    %v318 = vpop.f32.mrf.mxu0
    %v319 = vadd.f32 %v148, %v318
    %v320 = vpop.f32.mrf.mxu0
    %321 = vmatprep.mubr.f32.mxu0 0.0
    %v322 = vand.u32 %v49, 4294901760
    %323 = vmatmul.mubr.f32.gmra.mxu0 %v322
    %v324 = vpop.f32.mrf.mxu0
    %v325 = vadd.f32 %v158, %v324
    %v326 = vpop.f32.mrf.mxu0
    %327 = vmatprep.mubr.f32.mxu0 0.0
    %v328 = vand.u32 %v52, 4294901760
    %329 = vmatmul.mubr.f32.gmra.mxu0 %v328
    %v330 = vpop.f32.mrf.mxu0
    %v331 = vadd.f32 %v168, %v330
    %v332 = vpop.f32.mrf.mxu0
    %333 = vmatprep.mubr.f32.mxu0 0.0
    %v334 = vand.u32 %v55, 4294901760
    %335 = vmatmul.mubr.f32.gmra.mxu0 %v334
    %v336 = vpop.f32.mrf.mxu0
    %v337 = vadd.f32 %v178, %v336
    %v338 = vpop.f32.mrf.mxu0
    %339 = vmatprep.mubr.f32.mxu0 0.0
    %v340 = vand.u32 %v58, 4294901760
    %341 = vmatmul.mubr.f32.gmra.mxu0 %v340
    %v342 = vpop.f32.mrf.mxu0
    %v343 = vadd.f32 %v188, %v342
    %v344 = vpop.f32.mrf.mxu0
    %345 = vmatprep.mubr.f32.mxu0 0.0
    %v346 = vand.u32 %v61, 4294901760
    %347 = vmatmul.mubr.f32.gmra.mxu0 %v346
    %v348 = vpop.f32.mrf.mxu0
    %v349 = vadd.f32 %v198, %v348
    %v350 = vpop.f32.mrf.mxu0
    %351 = vmatprep.mubr.f32.mxu0 0.0
    %v352 = vand.u32 %v64, 4294901760
    %353 = vmatmul.mubr.f32.gmra.mxu0 %v352
    %v354 = vpop.f32.mrf.mxu0
    %v355 = vadd.f32 %v208, %v354
    %v356 = vpop.f32.mrf.mxu0
    %357 = vmatprep.mubr.f32.mxu0 0.0
    %v358 = vand.u32 %v67, 4294901760
    %359 = vmatmul.mubr.f32.gmra.mxu0 %v358
    %v360 = vpop.f32.mrf.mxu0
    %v361 = vadd.f32 %v218, %v360
    %v362 = vpop.f32.mrf.mxu0
    %363 = vmatprep.mubr.f32.mxu0 0.0
    %v364 = vand.u32 %v70, 4294901760
    %365 = vmatmul.mubr.f32.gmra.mxu0 %v364
    %v366 = vpop.f32.mrf.mxu0
    %v367 = vadd.f32 %v228, %v366
    %v368 = vpop.f32.mrf.mxu0
    %369 = vdwg.mxu0
    %370 = vmatprep.subr.mxu0 0.0
    %371 = vmatpush1.msra.mxu0 0.0
    %372 = vmatprep.subr.mxu0 0.0
    %373 = vmatpush1.msra.mxu0 0.0
    %374 = vmatprep.subr.mxu0 0.0
    %375 = vmatpush1.msra.mxu0 0.0
    %376 = vmatprep.subr.mxu0 0.0
    %377 = vmatpush1.msra.mxu0 0.0
    %378 = vmatprep.subr.mxu0 0.0
    %379 = vmatpush1.msra.mxu0 0.0
    %380 = vmatprep.subr.mxu0 0.0
    %381 = vmatpush1.msra.mxu0 0.0
    %382 = vmatprep.subr.mxu0 0.0
    %383 = vmatpush1.msra.mxu0 0.0
    %384 = vmatprep.subr.mxu0 0.0
    %385 = vmatpush1.msra.mxu0 0.0
    %386 = vmatprep.subr.mxu0 0.0
    %387 = vmatpush1.msra.mxu0 0.0
    %388 = vmatprep.subr.mxu0 0.0
    %389 = vmatpush1.msra.mxu0 0.0
    %390 = vmatprep.subr.mxu0 0.0
    %391 = vmatpush1.msra.mxu0 0.0
    %392 = vmatprep.subr.mxu0 0.0
    %393 = vmatpush1.msra.mxu0 0.0
    %394 = vmatprep.subr.mxu0 0.0
    %v395 = vand.u32 %v43, 4294901760
    %v396 = vsub.f32 %v43, %v395
    %397 = vmatpush1.msra.mxu0 %v396
    %398 = vmatprep.subr.mxu0 0.0
    %v399 = vand.u32 %v42, 4294901760
    %v400 = vsub.f32 %v42, %v399
    %401 = vmatpush1.msra.mxu0 %v400
    %402 = vmatprep.subr.mxu0 0.0
    %v403 = vand.u32 %v41, 4294901760
    %v404 = vsub.f32 %v41, %v403
    %405 = vmatpush1.msra.mxu0 %v404
    %406 = vmatprep.subr.mxu0 0.0
    %v407 = vand.u32 %v40, 4294901760
    %v408 = vsub.f32 %v40, %v407
    %409 = vmatpush1.msra.mxu0 %v408
    %410 = vmatprep.subr.mxu0 0.0
    %411 = vmatpush2.msra.mxu0 0.0
    %412 = vmatprep.subr.mxu0 0.0
    %413 = vmatpush2.msra.mxu0 0.0
    %414 = vmatprep.subr.mxu0 0.0
    %415 = vmatpush2.msra.mxu0 0.0
    %416 = vmatprep.subr.mxu0 0.0
    %417 = vmatpush2.msra.mxu0 0.0
    %418 = vmatprep.subr.mxu0 0.0
    %419 = vmatpush2.msra.mxu0 0.0
    %420 = vmatprep.subr.mxu0 0.0
    %421 = vmatpush2.msra.mxu0 0.0
    %422 = vmatprep.subr.mxu0 0.0
    %423 = vmatpush2.msra.mxu0 0.0
    %424 = vmatprep.subr.mxu0 0.0
    %425 = vmatpush2.msra.mxu0 0.0
    %426 = vmatprep.subr.mxu0 0.0
    %427 = vmatpush2.msra.mxu0 0.0
    %428 = vmatprep.subr.mxu0 0.0
    %429 = vmatpush2.msra.mxu0 0.0
    %430 = vmatprep.subr.mxu0 0.0
    %431 = vmatpush2.msra.mxu0 0.0
    %432 = vmatprep.subr.mxu0 0.0
    %433 = vmatpush2.msra.mxu0 0.0
    %434 = vmatprep.subr.mxu0 0.0
    %435 = vmatpush2.msra.mxu0 0.0
    %436 = vmatprep.subr.mxu0 0.0
    %437 = vmatpush2.msra.mxu0 0.0
    %438 = vmatprep.subr.mxu0 0.0
    %439 = vmatpush2.msra.mxu0 0.0
    %440 = vmatprep.subr.mxu0 0.0
    %441 = vmatpush2.msra.mxu0 0.0
    %442 = vmatprep.mubr.f32.mxu0 0.0
    %v443 = vand.u32 %v46, 4294901760
    %v444 = vsub.f32 %v46, %v443
    %445 = vmatmul.mubr.f32.gmra.mxu0 %v444
    %v446 = vpop.f32.mrf.mxu0
    %v447 = vadd.f32 %v319, %v446
    %v448 = vpop.f32.mrf.mxu0
    %449 = vmatprep.mubr.f32.mxu0 0.0
    %v450 = vand.u32 %v49, 4294901760
    %v451 = vsub.f32 %v49, %v450
    %452 = vmatmul.mubr.f32.gmra.mxu0 %v451
    %v453 = vpop.f32.mrf.mxu0
    %v454 = vadd.f32 %v325, %v453
    %v455 = vpop.f32.mrf.mxu0
    %456 = vmatprep.mubr.f32.mxu0 0.0
    %v457 = vand.u32 %v52, 4294901760
    %v458 = vsub.f32 %v52, %v457
    %459 = vmatmul.mubr.f32.gmra.mxu0 %v458
    %v460 = vpop.f32.mrf.mxu0
    %v461 = vadd.f32 %v331, %v460
    %v462 = vpop.f32.mrf.mxu0
    %463 = vmatprep.mubr.f32.mxu0 0.0
    %v464 = vand.u32 %v55, 4294901760
    %v465 = vsub.f32 %v55, %v464
    %466 = vmatmul.mubr.f32.gmra.mxu0 %v465
    %v467 = vpop.f32.mrf.mxu0
    %v468 = vadd.f32 %v337, %v467
    %v469 = vpop.f32.mrf.mxu0
    %470 = vmatprep.mubr.f32.mxu0 0.0
    %v471 = vand.u32 %v58, 4294901760
    %v472 = vsub.f32 %v58, %v471
    %473 = vmatmul.mubr.f32.gmra.mxu0 %v472
    %v474 = vpop.f32.mrf.mxu0
    %v475 = vadd.f32 %v343, %v474
    %v476 = vpop.f32.mrf.mxu0
    %477 = vmatprep.mubr.f32.mxu0 0.0
    %v478 = vand.u32 %v61, 4294901760
    %v479 = vsub.f32 %v61, %v478
    %480 = vmatmul.mubr.f32.gmra.mxu0 %v479
    %v481 = vpop.f32.mrf.mxu0
    %v482 = vadd.f32 %v349, %v481
    %v483 = vpop.f32.mrf.mxu0
    %484 = vmatprep.mubr.f32.mxu0 0.0
    %v485 = vand.u32 %v64, 4294901760
    %v486 = vsub.f32 %v64, %v485
    %487 = vmatmul.mubr.f32.gmra.mxu0 %v486
    %v488 = vpop.f32.mrf.mxu0
    %v489 = vadd.f32 %v355, %v488
    %v490 = vpop.f32.mrf.mxu0
    %491 = vmatprep.mubr.f32.mxu0 0.0
    %v492 = vand.u32 %v67, 4294901760
    %v493 = vsub.f32 %v67, %v492
    %494 = vmatmul.mubr.f32.gmra.mxu0 %v493
    %v495 = vpop.f32.mrf.mxu0
    %v496 = vadd.f32 %v361, %v495
    %v497 = vpop.f32.mrf.mxu0
    %498 = vmatprep.mubr.f32.mxu0 0.0
    %v499 = vand.u32 %v70, 4294901760
    %v500 = vsub.f32 %v70, %v499
    %501 = vmatmul.mubr.f32.gmra.mxu0 %v500
    %v502 = vpop.f32.mrf.mxu0
    %v503 = vadd.f32 %v367, %v502
    %v504 = vpop.f32.mrf.mxu0
    %505 = vdwg.mxu0
    %506 = vmatprep.subr.mxu0 0.0
    %507 = vmatpush1.msra.mxu0 0.0
    %508 = vmatprep.subr.mxu0 0.0
    %509 = vmatpush1.msra.mxu0 0.0
    %510 = vmatprep.subr.mxu0 0.0
    %511 = vmatpush1.msra.mxu0 0.0
    %512 = vmatprep.subr.mxu0 0.0
    %513 = vmatpush1.msra.mxu0 0.0
    %514 = vmatprep.subr.mxu0 0.0
    %515 = vmatpush1.msra.mxu0 0.0
    %516 = vmatprep.subr.mxu0 0.0
    %517 = vmatpush1.msra.mxu0 0.0
    %518 = vmatprep.subr.mxu0 0.0
    %519 = vmatpush1.msra.mxu0 0.0
    %520 = vmatprep.subr.mxu0 0.0
    %521 = vmatpush1.msra.mxu0 0.0
    %522 = vmatprep.subr.mxu0 0.0
    %523 = vmatpush1.msra.mxu0 0.0
    %524 = vmatprep.subr.mxu0 0.0
    %525 = vmatpush1.msra.mxu0 0.0
    %526 = vmatprep.subr.mxu0 0.0
    %527 = vmatpush1.msra.mxu0 0.0
    %528 = vmatprep.subr.mxu0 0.0
    %529 = vmatpush1.msra.mxu0 0.0
    %530 = vmatprep.subr.mxu0 0.0
    %v531 = vand.u32 %v43, 4294901760
    %532 = vmatpush1.msra.mxu0 %v531
    %533 = vmatprep.subr.mxu0 0.0
    %v534 = vand.u32 %v42, 4294901760
    %535 = vmatpush1.msra.mxu0 %v534
    %536 = vmatprep.subr.mxu0 0.0
    %v537 = vand.u32 %v41, 4294901760
    %538 = vmatpush1.msra.mxu0 %v537
    %539 = vmatprep.subr.mxu0 0.0
    %v540 = vand.u32 %v40, 4294901760
    %541 = vmatpush1.msra.mxu0 %v540
    %542 = vmatprep.subr.mxu0 0.0
    %543 = vmatpush2.msra.mxu0 0.0
    %544 = vmatprep.subr.mxu0 0.0
    %545 = vmatpush2.msra.mxu0 0.0
    %546 = vmatprep.subr.mxu0 0.0
    %547 = vmatpush2.msra.mxu0 0.0
    %548 = vmatprep.subr.mxu0 0.0
    %549 = vmatpush2.msra.mxu0 0.0
    %550 = vmatprep.subr.mxu0 0.0
    %551 = vmatpush2.msra.mxu0 0.0
    %552 = vmatprep.subr.mxu0 0.0
    %553 = vmatpush2.msra.mxu0 0.0
    %554 = vmatprep.subr.mxu0 0.0
    %555 = vmatpush2.msra.mxu0 0.0
    %556 = vmatprep.subr.mxu0 0.0
    %557 = vmatpush2.msra.mxu0 0.0
    %558 = vmatprep.subr.mxu0 0.0
    %559 = vmatpush2.msra.mxu0 0.0
    %560 = vmatprep.subr.mxu0 0.0
    %561 = vmatpush2.msra.mxu0 0.0
    %562 = vmatprep.subr.mxu0 0.0
    %563 = vmatpush2.msra.mxu0 0.0
    %564 = vmatprep.subr.mxu0 0.0
    %565 = vmatpush2.msra.mxu0 0.0
    %566 = vmatprep.subr.mxu0 0.0
    %567 = vmatpush2.msra.mxu0 0.0
    %568 = vmatprep.subr.mxu0 0.0
    %569 = vmatpush2.msra.mxu0 0.0
    %570 = vmatprep.subr.mxu0 0.0
    %571 = vmatpush2.msra.mxu0 0.0
    %572 = vmatprep.subr.mxu0 0.0
    %573 = vmatpush2.msra.mxu0 0.0
    %574 = vmatprep.mubr.f32.mxu0 0.0
    %v575 = vand.u32 %v46, 4294901760
    %v576 = vsub.f32 %v46, %v575
    %v577 = vand.u32 %v576, 4294901760
    %578 = vmatmul.mubr.f32.gmra.mxu0 %v577
    %v579 = vpop.f32.mrf.mxu0
    %v580 = vadd.f32 %v447, %v579
    %v581 = vpop.f32.mrf.mxu0
    %582 = vmatprep.mubr.f32.mxu0 0.0
    %v583 = vand.u32 %v49, 4294901760
    %v584 = vsub.f32 %v49, %v583
    %v585 = vand.u32 %v584, 4294901760
    %586 = vmatmul.mubr.f32.gmra.mxu0 %v585
    %v587 = vpop.f32.mrf.mxu0
    %v588 = vadd.f32 %v454, %v587
    %v589 = vpop.f32.mrf.mxu0
    %590 = vmatprep.mubr.f32.mxu0 0.0
    %v591 = vand.u32 %v52, 4294901760
    %v592 = vsub.f32 %v52, %v591
    %v593 = vand.u32 %v592, 4294901760
    %594 = vmatmul.mubr.f32.gmra.mxu0 %v593
    %v595 = vpop.f32.mrf.mxu0
    %v596 = vadd.f32 %v461, %v595
    %v597 = vpop.f32.mrf.mxu0
    %598 = vmatprep.mubr.f32.mxu0 0.0
    %v599 = vand.u32 %v55, 4294901760
    %v600 = vsub.f32 %v55, %v599
    %v601 = vand.u32 %v600, 4294901760
    %602 = vmatmul.mubr.f32.gmra.mxu0 %v601
    %v603 = vpop.f32.mrf.mxu0
    %v604 = vadd.f32 %v468, %v603
    %v605 = vpop.f32.mrf.mxu0
    %606 = vmatprep.mubr.f32.mxu0 0.0
    %v607 = vand.u32 %v58, 4294901760
    %v608 = vsub.f32 %v58, %v607
    %v609 = vand.u32 %v608, 4294901760
    %610 = vmatmul.mubr.f32.gmra.mxu0 %v609
    %v611 = vpop.f32.mrf.mxu0
    %v612 = vadd.f32 %v475, %v611
    %v613 = vpop.f32.mrf.mxu0
    %614 = vmatprep.mubr.f32.mxu0 0.0
    %v615 = vand.u32 %v61, 4294901760
    %v616 = vsub.f32 %v61, %v615
    %v617 = vand.u32 %v616, 4294901760
    %618 = vmatmul.mubr.f32.gmra.mxu0 %v617
    %v619 = vpop.f32.mrf.mxu0
    %v620 = vadd.f32 %v482, %v619
    %v621 = vpop.f32.mrf.mxu0
    %622 = vmatprep.mubr.f32.mxu0 0.0
    %v623 = vand.u32 %v64, 4294901760
    %v624 = vsub.f32 %v64, %v623
    %v625 = vand.u32 %v624, 4294901760
    %626 = vmatmul.mubr.f32.gmra.mxu0 %v625
    %v627 = vpop.f32.mrf.mxu0
    %v628 = vadd.f32 %v489, %v627
    %v629 = vpop.f32.mrf.mxu0
    %630 = vmatprep.mubr.f32.mxu0 0.0
    %v631 = vand.u32 %v67, 4294901760
    %v632 = vsub.f32 %v67, %v631
    %v633 = vand.u32 %v632, 4294901760
    %634 = vmatmul.mubr.f32.gmra.mxu0 %v633
    %v635 = vpop.f32.mrf.mxu0
    %v636 = vadd.f32 %v496, %v635
    %v637 = vpop.f32.mrf.mxu0
    %638 = vmatprep.mubr.f32.mxu0 0.0
    %v639 = vand.u32 %v70, 4294901760
    %v640 = vsub.f32 %v70, %v639
    %v641 = vand.u32 %v640, 4294901760
    %642 = vmatmul.mubr.f32.gmra.mxu0 %v641
    %v643 = vpop.f32.mrf.mxu0
    %v644 = vadd.f32 %v503, %v643
    %v645 = vpop.f32.mrf.mxu0
    %646 = vdwg.mxu0
    %647 = vmatprep.subr.mxu0 0.0
    %648 = vmatpush1.msra.mxu0 0.0
    %649 = vmatprep.subr.mxu0 0.0
    %650 = vmatpush1.msra.mxu0 0.0
    %651 = vmatprep.subr.mxu0 0.0
    %652 = vmatpush1.msra.mxu0 0.0
    %653 = vmatprep.subr.mxu0 0.0
    %654 = vmatpush1.msra.mxu0 0.0
    %655 = vmatprep.subr.mxu0 0.0
    %656 = vmatpush1.msra.mxu0 0.0
    %657 = vmatprep.subr.mxu0 0.0
    %658 = vmatpush1.msra.mxu0 0.0
    %659 = vmatprep.subr.mxu0 0.0
    %660 = vmatpush1.msra.mxu0 0.0
    %661 = vmatprep.subr.mxu0 0.0
    %662 = vmatpush1.msra.mxu0 0.0
    %663 = vmatprep.subr.mxu0 0.0
    %664 = vmatpush1.msra.mxu0 0.0
    %665 = vmatprep.subr.mxu0 0.0
    %666 = vmatpush1.msra.mxu0 0.0
    %667 = vmatprep.subr.mxu0 0.0
    %668 = vmatpush1.msra.mxu0 0.0
    %669 = vmatprep.subr.mxu0 0.0
    %670 = vmatpush1.msra.mxu0 0.0
    %671 = vmatprep.subr.mxu0 0.0
    %v672 = vand.u32 %v43, 4294901760
    %v673 = vsub.f32 %v43, %v672
    %v674 = vand.u32 %v673, 4294901760
    %675 = vmatpush1.msra.mxu0 %v674
    %676 = vmatprep.subr.mxu0 0.0
    %v677 = vand.u32 %v42, 4294901760
    %v678 = vsub.f32 %v42, %v677
    %v679 = vand.u32 %v678, 4294901760
    %680 = vmatpush1.msra.mxu0 %v679
    %681 = vmatprep.subr.mxu0 0.0
    %v682 = vand.u32 %v41, 4294901760
    %v683 = vsub.f32 %v41, %v682
    %v684 = vand.u32 %v683, 4294901760
    %685 = vmatpush1.msra.mxu0 %v684
    %686 = vmatprep.subr.mxu0 0.0
    %v687 = vand.u32 %v40, 4294901760
    %v688 = vsub.f32 %v40, %v687
    %v689 = vand.u32 %v688, 4294901760
    %690 = vmatpush1.msra.mxu0 %v689
    %691 = vmatprep.subr.mxu0 0.0
    %692 = vmatpush2.msra.mxu0 0.0
    %693 = vmatprep.subr.mxu0 0.0
    %694 = vmatpush2.msra.mxu0 0.0
    %695 = vmatprep.subr.mxu0 0.0
    %696 = vmatpush2.msra.mxu0 0.0
    %697 = vmatprep.subr.mxu0 0.0
    %698 = vmatpush2.msra.mxu0 0.0
    %699 = vmatprep.subr.mxu0 0.0
    %700 = vmatpush2.msra.mxu0 0.0
    %701 = vmatprep.subr.mxu0 0.0
    %702 = vmatpush2.msra.mxu0 0.0
    %703 = vmatprep.subr.mxu0 0.0
    %704 = vmatpush2.msra.mxu0 0.0
    %705 = vmatprep.subr.mxu0 0.0
    %706 = vmatpush2.msra.mxu0 0.0
    %707 = vmatprep.subr.mxu0 0.0
    %708 = vmatpush2.msra.mxu0 0.0
    %709 = vmatprep.subr.mxu0 0.0
    %710 = vmatpush2.msra.mxu0 0.0
    %711 = vmatprep.subr.mxu0 0.0
    %712 = vmatpush2.msra.mxu0 0.0
    %713 = vmatprep.subr.mxu0 0.0
    %714 = vmatpush2.msra.mxu0 0.0
    %715 = vmatprep.subr.mxu0 0.0
    %716 = vmatpush2.msra.mxu0 0.0
    %717 = vmatprep.subr.mxu0 0.0
    %718 = vmatpush2.msra.mxu0 0.0
    %719 = vmatprep.subr.mxu0 0.0
    %720 = vmatpush2.msra.mxu0 0.0
    %721 = vmatprep.subr.mxu0 0.0
    %722 = vmatpush2.msra.mxu0 0.0
    %723 = vmatprep.mubr.f32.mxu0 0.0
    %v724 = vand.u32 %v46, 4294901760
    %725 = vmatmul.mubr.f32.gmra.mxu0 %v724
    %v726 = vpop.f32.mrf.mxu0
    %v727 = vadd.f32 %v580, %v726
    %v728 = vpop.f32.mrf.mxu0
    %729 = vmatprep.mubr.f32.mxu0 0.0
    %v730 = vand.u32 %v49, 4294901760
    %731 = vmatmul.mubr.f32.gmra.mxu0 %v730
    %v732 = vpop.f32.mrf.mxu0
    %v733 = vadd.f32 %v588, %v732
    %v734 = vpop.f32.mrf.mxu0
    %735 = vmatprep.mubr.f32.mxu0 0.0
    %v736 = vand.u32 %v52, 4294901760
    %737 = vmatmul.mubr.f32.gmra.mxu0 %v736
    %v738 = vpop.f32.mrf.mxu0
    %v739 = vadd.f32 %v596, %v738
    %v740 = vpop.f32.mrf.mxu0
    %741 = vmatprep.mubr.f32.mxu0 0.0
    %v742 = vand.u32 %v55, 4294901760
    %743 = vmatmul.mubr.f32.gmra.mxu0 %v742
    %v744 = vpop.f32.mrf.mxu0
    %v745 = vadd.f32 %v604, %v744
    %v746 = vpop.f32.mrf.mxu0
    %747 = vmatprep.mubr.f32.mxu0 0.0
    %v748 = vand.u32 %v58, 4294901760
    %749 = vmatmul.mubr.f32.gmra.mxu0 %v748
    %v750 = vpop.f32.mrf.mxu0
    %v751 = vadd.f32 %v612, %v750
    %v752 = vpop.f32.mrf.mxu0
    %753 = vmatprep.mubr.f32.mxu0 0.0
    %v754 = vand.u32 %v61, 4294901760
    %755 = vmatmul.mubr.f32.gmra.mxu0 %v754
    %v756 = vpop.f32.mrf.mxu0
    %v757 = vadd.f32 %v620, %v756
    %v758 = vpop.f32.mrf.mxu0
    %759 = vmatprep.mubr.f32.mxu0 0.0
    %v760 = vand.u32 %v64, 4294901760
    %761 = vmatmul.mubr.f32.gmra.mxu0 %v760
    %v762 = vpop.f32.mrf.mxu0
    %v763 = vadd.f32 %v628, %v762
    %v764 = vpop.f32.mrf.mxu0
    %765 = vmatprep.mubr.f32.mxu0 0.0
    %v766 = vand.u32 %v67, 4294901760
    %767 = vmatmul.mubr.f32.gmra.mxu0 %v766
    %v768 = vpop.f32.mrf.mxu0
    %v769 = vadd.f32 %v636, %v768
    %v770 = vpop.f32.mrf.mxu0
    %771 = vmatprep.mubr.f32.mxu0 0.0
    %v772 = vand.u32 %v70, 4294901760
    %773 = vmatmul.mubr.f32.gmra.mxu0 %v772
    %v774 = vpop.f32.mrf.mxu0
    %v775 = vadd.f32 %v644, %v774
    %v776 = vpop.f32.mrf.mxu0
    %777 = vdwg.mxu0
    %778 = vmatprep.subr.mxu0 0.0
    %779 = vmatpush1.msra.mxu0 0.0
    %780 = vmatprep.subr.mxu0 0.0
    %781 = vmatpush1.msra.mxu0 0.0
    %782 = vmatprep.subr.mxu0 0.0
    %783 = vmatpush1.msra.mxu0 0.0
    %784 = vmatprep.subr.mxu0 0.0
    %785 = vmatpush1.msra.mxu0 0.0
    %786 = vmatprep.subr.mxu0 0.0
    %787 = vmatpush1.msra.mxu0 0.0
    %788 = vmatprep.subr.mxu0 0.0
    %789 = vmatpush1.msra.mxu0 0.0
    %790 = vmatprep.subr.mxu0 0.0
    %791 = vmatpush1.msra.mxu0 0.0
    %792 = vmatprep.subr.mxu0 0.0
    %793 = vmatpush1.msra.mxu0 0.0
    %794 = vmatprep.subr.mxu0 0.0
    %795 = vmatpush1.msra.mxu0 0.0
    %796 = vmatprep.subr.mxu0 0.0
    %797 = vmatpush1.msra.mxu0 0.0
    %798 = vmatprep.subr.mxu0 0.0
    %799 = vmatpush1.msra.mxu0 0.0
    %800 = vmatprep.subr.mxu0 0.0
    %801 = vmatpush1.msra.mxu0 0.0
    %802 = vmatprep.subr.mxu0 0.0
    %v803 = vand.u32 %v43, 4294901760
    %804 = vmatpush1.msra.mxu0 %v803
    %805 = vmatprep.subr.mxu0 0.0
    %v806 = vand.u32 %v42, 4294901760
    %807 = vmatpush1.msra.mxu0 %v806
    %808 = vmatprep.subr.mxu0 0.0
    %v809 = vand.u32 %v41, 4294901760
    %810 = vmatpush1.msra.mxu0 %v809
    %811 = vmatprep.subr.mxu0 0.0
    %v812 = vand.u32 %v40, 4294901760
    %813 = vmatpush1.msra.mxu0 %v812
    %814 = vmatprep.subr.mxu0 0.0
    %815 = vmatpush2.msra.mxu0 0.0
    %816 = vmatprep.subr.mxu0 0.0
    %817 = vmatpush2.msra.mxu0 0.0
    %818 = vmatprep.subr.mxu0 0.0
    %819 = vmatpush2.msra.mxu0 0.0
    %820 = vmatprep.subr.mxu0 0.0
    %821 = vmatpush2.msra.mxu0 0.0
    %822 = vmatprep.subr.mxu0 0.0
    %823 = vmatpush2.msra.mxu0 0.0
    %824 = vmatprep.subr.mxu0 0.0
    %825 = vmatpush2.msra.mxu0 0.0
    %826 = vmatprep.subr.mxu0 0.0
    %827 = vmatpush2.msra.mxu0 0.0
    %828 = vmatprep.subr.mxu0 0.0
    %829 = vmatpush2.msra.mxu0 0.0
    %830 = vmatprep.subr.mxu0 0.0
    %831 = vmatpush2.msra.mxu0 0.0
    %832 = vmatprep.subr.mxu0 0.0
    %833 = vmatpush2.msra.mxu0 0.0
    %834 = vmatprep.subr.mxu0 0.0
    %835 = vmatpush2.msra.mxu0 0.0
    %836 = vmatprep.subr.mxu0 0.0
    %837 = vmatpush2.msra.mxu0 0.0
    %838 = vmatprep.subr.mxu0 0.0
    %839 = vmatpush2.msra.mxu0 0.0
    %840 = vmatprep.subr.mxu0 0.0
    %841 = vmatpush2.msra.mxu0 0.0
    %842 = vmatprep.subr.mxu0 0.0
    %843 = vmatpush2.msra.mxu0 0.0
    %844 = vmatprep.subr.mxu0 0.0
    %845 = vmatpush2.msra.mxu0 0.0
    %846 = vmatprep.mubr.f32.mxu0 0.0
    %v847 = vand.u32 %v46, 4294901760
    %848 = vmatmul.mubr.f32.gmra.mxu0 %v847
    %v849 = vpop.f32.mrf.mxu0
    %v850 = vadd.f32 %v727, %v849
    %v851 = vpop.f32.mrf.mxu0
    %852 = vmatprep.mubr.f32.mxu0 0.0
    %v853 = vand.u32 %v49, 4294901760
    %854 = vmatmul.mubr.f32.gmra.mxu0 %v853
    %v855 = vpop.f32.mrf.mxu0
    %v856 = vadd.f32 %v733, %v855
    %v857 = vpop.f32.mrf.mxu0
    %858 = vmatprep.mubr.f32.mxu0 0.0
    %v859 = vand.u32 %v52, 4294901760
    %860 = vmatmul.mubr.f32.gmra.mxu0 %v859
    %v861 = vpop.f32.mrf.mxu0
    %v862 = vadd.f32 %v739, %v861
    %v863 = vpop.f32.mrf.mxu0
    %864 = vmatprep.mubr.f32.mxu0 0.0
    %v865 = vand.u32 %v55, 4294901760
    %866 = vmatmul.mubr.f32.gmra.mxu0 %v865
    %v867 = vpop.f32.mrf.mxu0
    %v868 = vadd.f32 %v745, %v867
    %v869 = vpop.f32.mrf.mxu0
    %870 = vmatprep.mubr.f32.mxu0 0.0
    %v871 = vand.u32 %v58, 4294901760
    %872 = vmatmul.mubr.f32.gmra.mxu0 %v871
    %v873 = vpop.f32.mrf.mxu0
    %v874 = vadd.f32 %v751, %v873
    %v875 = vpop.f32.mrf.mxu0
    %876 = vmatprep.mubr.f32.mxu0 0.0
    %v877 = vand.u32 %v61, 4294901760
    %878 = vmatmul.mubr.f32.gmra.mxu0 %v877
    %v879 = vpop.f32.mrf.mxu0
    %v880 = vadd.f32 %v757, %v879
    %v881 = vpop.f32.mrf.mxu0
    %882 = vmatprep.mubr.f32.mxu0 0.0
    %v883 = vand.u32 %v64, 4294901760
    %884 = vmatmul.mubr.f32.gmra.mxu0 %v883
    %v885 = vpop.f32.mrf.mxu0
    %v886 = vadd.f32 %v763, %v885
    %v887 = vpop.f32.mrf.mxu0
    %888 = vmatprep.mubr.f32.mxu0 0.0
    %v889 = vand.u32 %v67, 4294901760
    %890 = vmatmul.mubr.f32.gmra.mxu0 %v889
    %v891 = vpop.f32.mrf.mxu0
    %v892 = vadd.f32 %v769, %v891
    %v893 = vpop.f32.mrf.mxu0
    %894 = vmatprep.mubr.f32.mxu0 0.0
    %v895 = vand.u32 %v70, 4294901760
    %896 = vmatmul.mubr.f32.gmra.mxu0 %v895
    %v897 = vpop.f32.mrf.mxu0
    %v898 = vadd.f32 %v775, %v897
    %v899 = vpop.f32.mrf.mxu0
    %900 = vdwg.mxu0
    %vm906 = vcmask 1046528
    %v907 = vrot.slane %v850, 1
    %v908 = vrot.slane %v856, 1
    %v909 = vsel %vm906, %v907, %v908
    %v910 = vrot.slane %v862, 1
    %v911 = vsel %vm906, %v908, %v910
    %v912 = vrot.slane %v868, 1
    %v913 = vsel %vm906, %v910, %v912
    %v914 = vrot.slane %v874, 1
    %v915 = vsel %vm906, %v912, %v914
    %916 = vrot.lane.b32.xlu0 %v909, 64
    %v917 = vpop.permute.xlu0 %916
    %918 = vrot.lane.b32.xlu0 %v911, 64
    %v919 = vpop.permute.xlu0 %918
    %920 = vrot.lane.b32.xlu0 %v913, 64
    %v921 = vpop.permute.xlu0 %920
    %922 = vrot.lane.b32.xlu0 %v915, 64
    %v923 = vpop.permute.xlu0 %922
    %vm928 = vcmask 1045504
    %v929 = vrot.slane %v850, 2
    %v930 = vrot.slane %v856, 2
    %v931 = vsel %vm928, %v929, %v930
    %v932 = vrot.slane %v862, 2
    %v933 = vsel %vm928, %v930, %v932
    %v934 = vrot.slane %v868, 2
    %v935 = vsel %vm928, %v932, %v934
    %v936 = vrot.slane %v874, 2
    %v937 = vsel %vm928, %v934, %v936
    %vm938 = vcmask 523264
    %v939 = vsel %vm938, %v850, %v917
    %v940 = vsel %vm938, %v856, %v919
    %v941 = vsel %vm938, %v862, %v921
    %v942 = vsel %vm938, %v868, %v923
    %v947 = vrot.slane %v880, 1
    %v948 = vsel %vm906, %v914, %v947
    %v949 = vrot.slane %v886, 1
    %v950 = vsel %vm906, %v947, %v949
    %v951 = vrot.slane %v892, 1
    %v952 = vsel %vm906, %v949, %v951
    %v953 = vrot.slane %v898, 1
    %v954 = vsel %vm906, %v951, %v953
    %955 = vrot.lane.b32.xlu0 %v948, 64
    %v956 = vpop.permute.xlu0 %955
    %957 = vrot.lane.b32.xlu0 %v950, 64
    %v958 = vpop.permute.xlu0 %957
    %959 = vrot.lane.b32.xlu0 %v952, 64
    %v960 = vpop.permute.xlu0 %959
    %961 = vrot.lane.b32.xlu0 %v954, 64
    %v962 = vpop.permute.xlu0 %961
    %963 = vrot.lane.b32.xlu0 %v953, 64
    %v964 = vpop.permute.xlu0 %963
    %v970 = vrot.slane %v880, 2
    %v971 = vsel %vm928, %v936, %v970
    %v972 = vrot.slane %v886, 2
    %v973 = vsel %vm928, %v970, %v972
    %v974 = vrot.slane %v892, 2
    %v975 = vsel %vm928, %v972, %v974
    %v976 = vrot.slane %v898, 2
    %v977 = vsel %vm928, %v974, %v976
    %v978 = vsel %vm938, %v874, %v956
    %v979 = vsel %vm938, %v880, %v958
    %v980 = vsel %vm938, %v886, %v960
    %v981 = vsel %vm938, %v892, %v962
    %v982 = vsel %vm938, %v898, %v964
    %v988 = vrot.slane %v978, 2
    %v989 = vrot.slane %v979, 2
    %v990 = vsel %vm928, %v988, %v989
    %v991 = vrot.slane %v971, 2
    %v992 = vrot.slane %v973, 2
    %v993 = vsel %vm928, %v991, %v992
    %v994 = vrot.slane %v980, 2
    %v995 = vsel %vm928, %v989, %v994
    %v996 = vrot.slane %v975, 2
    %v997 = vsel %vm928, %v992, %v996
    %v998 = vrot.slane %v981, 2
    %v999 = vsel %vm928, %v994, %v998
    %v1000 = vrot.slane %v977, 2
    %v1001 = vsel %vm928, %v996, %v1000
    %v1002 = vrot.slane %v982, 2
    %v1003 = vsel %vm928, %v998, %v1002
    %v1004 = vrot.slane %v976, 2
    %v1005 = vsel %vm928, %v1000, %v1004
    %v1010 = vld [vmem:[%s2] sm:$0xff]
    %v1011 = vld [vmem:[%s2 + $0x8] sm:$0xff]
    %v1012 = vld [vmem:[%s2 + $0x10] sm:$0xff]
    %v1013 = vld [vmem:[%s2 + $0x18] sm:$0xff]
    %v1014 = vld [vmem:[%s2 + $0x20] sm:$0xff]
    %v1015 = vld [vmem:[%s2 + $0x28] sm:$0xff]
    %v1016 = vld [vmem:[%s2 + $0x30] sm:$0xff]
    %v1017 = vld [vmem:[%s2 + $0x38] sm:$0xff]
    %v1018 = vld [vmem:[%s2 + $0x40] sm:$0xff]
    %v1019 = vld [vmem:[%s2 + $0x48] sm:$0xff]
    %v1020 = vld [vmem:[%s2 + $0x50] sm:$0xff]
    %v1021 = vld [vmem:[%s2 + $0x58] sm:$0xff]
    %v1022 = vld [vmem:[%s2 + $0x60] sm:$0xff]
    %v1023 = vld [vmem:[%s2 + $0x68] sm:$0xff]
    %v1024 = vld [vmem:[%s2 + $0x70] sm:$0xff]
    %v1025 = vld [vmem:[%s2 + $0x78] sm:$0xff]
    %v1026 = vld [vmem:[%s2 + $0x80] sm:$0xff]
    %v1027 = vld [vmem:[%s2 + $0x88] sm:$0xff]
    %v1028 = vld [vmem:[%s2 + $0x90] sm:$0xff]
    %v1029 = vld [vmem:[%s2 + $0x98] sm:$0xff]
    %v1030 = vld [vmem:[%s2 + $0xa0] sm:$0xff]
    %v1031 = vld [vmem:[%s2 + $0xa8] sm:$0xff]
    %v1032 = vld [vmem:[%s2 + $0xb0] sm:$0xff]
    %v1033 = vld [vmem:[%s2 + $0xb8] sm:$0xff]
    %v1034 = vld [vmem:[%s2 + $0xc0] sm:$0xff]
    %v1035 = vld [vmem:[%s2 + $0xc8] sm:$0xff]
    %v1036 = vld [vmem:[%s2 + $0xd0] sm:$0xff]
    %v1037 = vld [vmem:[%s2 + $0xd8] sm:$0xff]
    %v1038 = vld [vmem:[%s2 + $0xe0] sm:$0xff]
    %v1039 = vld [vmem:[%s2 + $0xe8] sm:$0xff]
    %v1040 = vld [vmem:[%s2 + $0xf0] sm:$0xff]
    %v1041 = vld [vmem:[%s2 + $0xf8] sm:$0xff]
    %v1042 = vld [vmem:[%s2 + $0x100] sm:$0xff]
    %v1043 = vld [vmem:[%s2 + $0x108] sm:$0xff]
    %v1044 = vld [vmem:[%s2 + $0x110] sm:$0xff]
    %v1045 = vld [vmem:[%s2 + $0x118] sm:$0xff]
    %v1046 = vld [vmem:[%s2 + $0x120] sm:$0xff]
    %v1047 = vld [vmem:[%s2 + $0x128] sm:$0xff]
    %v1048 = vld [vmem:[%s2 + $0x130] sm:$0xff]
    %v1049 = vld [vmem:[%s2 + $0x138] sm:$0xff]
    %v1050 = vld [vmem:[%s2 + $0x140] sm:$0xff]
    %v1051 = vld [vmem:[%s2 + $0x148] sm:$0xff]
    %v1052 = vld [vmem:[%s2 + $0x150] sm:$0xff]
    %v1053 = vld [vmem:[%s2 + $0x158] sm:$0xff]
    %v1054 = vld [vmem:[%s2 + $0x160] sm:$0xff]
    %v1055 = vld [vmem:[%s2 + $0x168] sm:$0xff]
    %v1056 = vld [vmem:[%s2 + $0x170] sm:$0xff]
    %v1057 = vld [vmem:[%s2 + $0x178] sm:$0xff]
    %v1058 = vld [vmem:[%s3] sm:$0x3]
    %v1060 = vlaneseq
    %v1061 = vshrl.u32 %v1060, 7
    %v1062 = vsub.s32 0, %v1061
    %v1063 = vrot.slane %v1058, %v1062
    %v1064 = vlaneseq
    %v1065 = vshrl.u32 %v1064, 7
    %v1066 = vsub.s32 1, %v1065
    %v1067 = vrot.slane %v1058, %v1066
    %v1070 = vsel %vm938, %v931, 0
    %v1072 = vsel %vm938, %v933, 0
    %v1074 = vsel %vm938, %v935, 0
    %v1076 = vsel %vm938, %v937, 0
    %v1078 = vsel %vm938, %v993, 0
    %v1080 = vsel %vm938, %v997, 0
    %v1082 = vsel %vm938, %v1001, 0
    %v1084 = vsel %vm938, %v1005, 0
    %v1086 = vand.u32 %v1041, 4294901760
    %1087 = vmatprep.subr.mxu0 %v1086
    %v1088 = vand.u32 %v1040, 4294901760
    %1089 = vmatpush1.msra.mxu0 %v1088
    %v1090 = vand.u32 %v1039, 4294901760
    %1091 = vmatprep.subr.mxu0 %v1090
    %v1092 = vand.u32 %v1038, 4294901760
    %1093 = vmatpush1.msra.mxu0 %v1092
    %v1094 = vand.u32 %v1037, 4294901760
    %1095 = vmatprep.subr.mxu0 %v1094
    %v1096 = vand.u32 %v1036, 4294901760
    %1097 = vmatpush1.msra.mxu0 %v1096
    %v1098 = vand.u32 %v1035, 4294901760
    %1099 = vmatprep.subr.mxu0 %v1098
    %v1100 = vand.u32 %v1034, 4294901760
    %1101 = vmatpush1.msra.mxu0 %v1100
    %v1102 = vand.u32 %v1033, 4294901760
    %1103 = vmatprep.subr.mxu0 %v1102
    %v1104 = vand.u32 %v1032, 4294901760
    %1105 = vmatpush1.msra.mxu0 %v1104
    %v1106 = vand.u32 %v1031, 4294901760
    %1107 = vmatprep.subr.mxu0 %v1106
    %v1108 = vand.u32 %v1030, 4294901760
    %1109 = vmatpush1.msra.mxu0 %v1108
    %v1110 = vand.u32 %v1029, 4294901760
    %1111 = vmatprep.subr.mxu0 %v1110
    %v1112 = vand.u32 %v1028, 4294901760
    %1113 = vmatpush1.msra.mxu0 %v1112
    %v1114 = vand.u32 %v1027, 4294901760
    %1115 = vmatprep.subr.mxu0 %v1114
    %v1116 = vand.u32 %v1026, 4294901760
    %1117 = vmatpush1.msra.mxu0 %v1116
    %v1118 = vand.u32 %v1025, 4294901760
    %1119 = vmatprep.subr.mxu0 %v1118
    %v1120 = vand.u32 %v1024, 4294901760
    %1121 = vmatpush1.msra.mxu0 %v1120
    %v1122 = vand.u32 %v1023, 4294901760
    %1123 = vmatprep.subr.mxu0 %v1122
    %v1124 = vand.u32 %v1022, 4294901760
    %1125 = vmatpush1.msra.mxu0 %v1124
    %v1126 = vand.u32 %v1021, 4294901760
    %1127 = vmatprep.subr.mxu0 %v1126
    %v1128 = vand.u32 %v1020, 4294901760
    %1129 = vmatpush1.msra.mxu0 %v1128
    %v1130 = vand.u32 %v1019, 4294901760
    %1131 = vmatprep.subr.mxu0 %v1130
    %v1132 = vand.u32 %v1018, 4294901760
    %1133 = vmatpush1.msra.mxu0 %v1132
    %v1134 = vand.u32 %v1017, 4294901760
    %1135 = vmatprep.subr.mxu0 %v1134
    %v1136 = vand.u32 %v1016, 4294901760
    %1137 = vmatpush1.msra.mxu0 %v1136
    %v1138 = vand.u32 %v1015, 4294901760
    %1139 = vmatprep.subr.mxu0 %v1138
    %v1140 = vand.u32 %v1014, 4294901760
    %1141 = vmatpush1.msra.mxu0 %v1140
    %v1142 = vand.u32 %v1013, 4294901760
    %1143 = vmatprep.subr.mxu0 %v1142
    %v1144 = vand.u32 %v1012, 4294901760
    %1145 = vmatpush1.msra.mxu0 %v1144
    %v1146 = vand.u32 %v1011, 4294901760
    %1147 = vmatprep.subr.mxu0 %v1146
    %v1148 = vand.u32 %v1010, 4294901760
    %1149 = vmatpush1.msra.mxu0 %v1148
    %1150 = vmatprep.subr.mxu0 0.0
    %1151 = vmatpush2.msra.mxu0 0.0
    %1152 = vmatprep.subr.mxu0 0.0
    %1153 = vmatpush2.msra.mxu0 0.0
    %1154 = vmatprep.subr.mxu0 0.0
    %1155 = vmatpush2.msra.mxu0 0.0
    %1156 = vmatprep.subr.mxu0 0.0
    %1157 = vmatpush2.msra.mxu0 0.0
    %1158 = vmatprep.subr.mxu0 0.0
    %1159 = vmatpush2.msra.mxu0 0.0
    %1160 = vmatprep.subr.mxu0 0.0
    %1161 = vmatpush2.msra.mxu0 0.0
    %1162 = vmatprep.subr.mxu0 0.0
    %1163 = vmatpush2.msra.mxu0 0.0
    %1164 = vmatprep.subr.mxu0 0.0
    %1165 = vmatpush2.msra.mxu0 0.0
    %v1166 = vand.u32 %v1057, 4294901760
    %1167 = vmatprep.subr.mxu0 %v1166
    %v1168 = vand.u32 %v1056, 4294901760
    %1169 = vmatpush2.msra.mxu0 %v1168
    %v1170 = vand.u32 %v1055, 4294901760
    %1171 = vmatprep.subr.mxu0 %v1170
    %v1172 = vand.u32 %v1054, 4294901760
    %1173 = vmatpush2.msra.mxu0 %v1172
    %v1174 = vand.u32 %v1053, 4294901760
    %1175 = vmatprep.subr.mxu0 %v1174
    %v1176 = vand.u32 %v1052, 4294901760
    %1177 = vmatpush2.msra.mxu0 %v1176
    %v1178 = vand.u32 %v1051, 4294901760
    %1179 = vmatprep.subr.mxu0 %v1178
    %v1180 = vand.u32 %v1050, 4294901760
    %1181 = vmatpush2.msra.mxu0 %v1180
    %v1182 = vand.u32 %v1049, 4294901760
    %1183 = vmatprep.subr.mxu0 %v1182
    %v1184 = vand.u32 %v1048, 4294901760
    %1185 = vmatpush2.msra.mxu0 %v1184
    %v1186 = vand.u32 %v1047, 4294901760
    %1187 = vmatprep.subr.mxu0 %v1186
    %v1188 = vand.u32 %v1046, 4294901760
    %1189 = vmatpush2.msra.mxu0 %v1188
    %v1190 = vand.u32 %v1045, 4294901760
    %1191 = vmatprep.subr.mxu0 %v1190
    %v1192 = vand.u32 %v1044, 4294901760
    %1193 = vmatpush2.msra.mxu0 %v1192
    %v1194 = vand.u32 %v1043, 4294901760
    %1195 = vmatprep.subr.mxu0 %v1194
    %v1196 = vand.u32 %v1042, 4294901760
    %1197 = vmatpush2.msra.mxu0 %v1196
    %v1198 = vand.u32 %v1070, 4294901760
    %v1199 = vsub.f32 %v1070, %v1198
    %v1200 = vand.u32 %v1199, 4294901760
    %v1201 = vsub.f32 %v1199, %v1200
    %v1202 = vand.u32 %v1201, 4294901760
    %1203 = vmatprep.mubr.f32.mxu0 %v1202
    %v1204 = vand.u32 %v939, 4294901760
    %v1205 = vsub.f32 %v939, %v1204
    %v1206 = vand.u32 %v1205, 4294901760
    %v1207 = vsub.f32 %v1205, %v1206
    %v1208 = vand.u32 %v1207, 4294901760
    %1209 = vmatmul.mubr.f32.gmra.mxu0 %v1208
    %v1210 = vpop.f32.mrf.mxu0
    %v1211 = vadd.f32 %v1063, %v1210
    %v1212 = vpop.f32.mrf.mxu0
    %v1213 = vadd.f32 %v1067, %v1212
    %v1214 = vand.u32 %v1072, 4294901760
    %v1215 = vsub.f32 %v1072, %v1214
    %v1216 = vand.u32 %v1215, 4294901760
    %v1217 = vsub.f32 %v1215, %v1216
    %v1218 = vand.u32 %v1217, 4294901760
    %1219 = vmatprep.mubr.f32.mxu0 %v1218
    %v1220 = vand.u32 %v940, 4294901760
    %v1221 = vsub.f32 %v940, %v1220
    %v1222 = vand.u32 %v1221, 4294901760
    %v1223 = vsub.f32 %v1221, %v1222
    %v1224 = vand.u32 %v1223, 4294901760
    %1225 = vmatmul.mubr.f32.gmra.mxu0 %v1224
    %v1226 = vpop.f32.mrf.mxu0
    %v1227 = vadd.f32 %v1063, %v1226
    %v1228 = vpop.f32.mrf.mxu0
    %v1229 = vadd.f32 %v1067, %v1228
    %v1230 = vand.u32 %v1074, 4294901760
    %v1231 = vsub.f32 %v1074, %v1230
    %v1232 = vand.u32 %v1231, 4294901760
    %v1233 = vsub.f32 %v1231, %v1232
    %v1234 = vand.u32 %v1233, 4294901760
    %1235 = vmatprep.mubr.f32.mxu0 %v1234
    %v1236 = vand.u32 %v941, 4294901760
    %v1237 = vsub.f32 %v941, %v1236
    %v1238 = vand.u32 %v1237, 4294901760
    %v1239 = vsub.f32 %v1237, %v1238
    %v1240 = vand.u32 %v1239, 4294901760
    %1241 = vmatmul.mubr.f32.gmra.mxu0 %v1240
    %v1242 = vpop.f32.mrf.mxu0
    %v1243 = vadd.f32 %v1063, %v1242
    %v1244 = vpop.f32.mrf.mxu0
    %v1245 = vadd.f32 %v1067, %v1244
    %v1246 = vand.u32 %v1076, 4294901760
    %v1247 = vsub.f32 %v1076, %v1246
    %v1248 = vand.u32 %v1247, 4294901760
    %v1249 = vsub.f32 %v1247, %v1248
    %v1250 = vand.u32 %v1249, 4294901760
    %1251 = vmatprep.mubr.f32.mxu0 %v1250
    %v1252 = vand.u32 %v942, 4294901760
    %v1253 = vsub.f32 %v942, %v1252
    %v1254 = vand.u32 %v1253, 4294901760
    %v1255 = vsub.f32 %v1253, %v1254
    %v1256 = vand.u32 %v1255, 4294901760
    %1257 = vmatmul.mubr.f32.gmra.mxu0 %v1256
    %v1258 = vpop.f32.mrf.mxu0
    %v1259 = vadd.f32 %v1063, %v1258
    %v1260 = vpop.f32.mrf.mxu0
    %v1261 = vadd.f32 %v1067, %v1260
    %v1262 = vand.u32 %v1078, 4294901760
    %v1263 = vsub.f32 %v1078, %v1262
    %v1264 = vand.u32 %v1263, 4294901760
    %v1265 = vsub.f32 %v1263, %v1264
    %v1266 = vand.u32 %v1265, 4294901760
    %1267 = vmatprep.mubr.f32.mxu0 %v1266
    %v1268 = vand.u32 %v990, 4294901760
    %v1269 = vsub.f32 %v990, %v1268
    %v1270 = vand.u32 %v1269, 4294901760
    %v1271 = vsub.f32 %v1269, %v1270
    %v1272 = vand.u32 %v1271, 4294901760
    %1273 = vmatmul.mubr.f32.gmra.mxu0 %v1272
    %v1274 = vpop.f32.mrf.mxu0
    %v1275 = vadd.f32 %v1063, %v1274
    %v1276 = vpop.f32.mrf.mxu0
    %v1277 = vadd.f32 %v1067, %v1276
    %v1278 = vand.u32 %v1080, 4294901760
    %v1279 = vsub.f32 %v1080, %v1278
    %v1280 = vand.u32 %v1279, 4294901760
    %v1281 = vsub.f32 %v1279, %v1280
    %v1282 = vand.u32 %v1281, 4294901760
    %1283 = vmatprep.mubr.f32.mxu0 %v1282
    %v1284 = vand.u32 %v995, 4294901760
    %v1285 = vsub.f32 %v995, %v1284
    %v1286 = vand.u32 %v1285, 4294901760
    %v1287 = vsub.f32 %v1285, %v1286
    %v1288 = vand.u32 %v1287, 4294901760
    %1289 = vmatmul.mubr.f32.gmra.mxu0 %v1288
    %v1290 = vpop.f32.mrf.mxu0
    %v1291 = vadd.f32 %v1063, %v1290
    %v1292 = vpop.f32.mrf.mxu0
    %v1293 = vadd.f32 %v1067, %v1292
    %v1294 = vand.u32 %v1082, 4294901760
    %v1295 = vsub.f32 %v1082, %v1294
    %v1296 = vand.u32 %v1295, 4294901760
    %v1297 = vsub.f32 %v1295, %v1296
    %v1298 = vand.u32 %v1297, 4294901760
    %1299 = vmatprep.mubr.f32.mxu0 %v1298
    %v1300 = vand.u32 %v999, 4294901760
    %v1301 = vsub.f32 %v999, %v1300
    %v1302 = vand.u32 %v1301, 4294901760
    %v1303 = vsub.f32 %v1301, %v1302
    %v1304 = vand.u32 %v1303, 4294901760
    %1305 = vmatmul.mubr.f32.gmra.mxu0 %v1304
    %v1306 = vpop.f32.mrf.mxu0
    %v1307 = vadd.f32 %v1063, %v1306
    %v1308 = vpop.f32.mrf.mxu0
    %v1309 = vadd.f32 %v1067, %v1308
    %v1310 = vand.u32 %v1084, 4294901760
    %v1311 = vsub.f32 %v1084, %v1310
    %v1312 = vand.u32 %v1311, 4294901760
    %v1313 = vsub.f32 %v1311, %v1312
    %v1314 = vand.u32 %v1313, 4294901760
    %1315 = vmatprep.mubr.f32.mxu0 %v1314
    %v1316 = vand.u32 %v1003, 4294901760
    %v1317 = vsub.f32 %v1003, %v1316
    %v1318 = vand.u32 %v1317, 4294901760
    %v1319 = vsub.f32 %v1317, %v1318
    %v1320 = vand.u32 %v1319, 4294901760
    %1321 = vmatmul.mubr.f32.gmra.mxu0 %v1320
    %v1322 = vpop.f32.mrf.mxu0
    %v1323 = vadd.f32 %v1063, %v1322
    %v1324 = vpop.f32.mrf.mxu0
    %v1325 = vadd.f32 %v1067, %v1324
    %1326 = vdwg.mxu0
    %v1327 = vand.u32 %v1041, 4294901760
    %v1328 = vsub.f32 %v1041, %v1327
    %v1329 = vand.u32 %v1328, 4294901760
    %v1330 = vsub.f32 %v1328, %v1329
    %v1331 = vand.u32 %v1330, 4294901760
    %1332 = vmatprep.subr.mxu0 %v1331
    %v1333 = vand.u32 %v1040, 4294901760
    %v1334 = vsub.f32 %v1040, %v1333
    %v1335 = vand.u32 %v1334, 4294901760
    %v1336 = vsub.f32 %v1334, %v1335
    %v1337 = vand.u32 %v1336, 4294901760
    %1338 = vmatpush1.msra.mxu0 %v1337
    %v1339 = vand.u32 %v1039, 4294901760
    %v1340 = vsub.f32 %v1039, %v1339
    %v1341 = vand.u32 %v1340, 4294901760
    %v1342 = vsub.f32 %v1340, %v1341
    %v1343 = vand.u32 %v1342, 4294901760
    %1344 = vmatprep.subr.mxu0 %v1343
    %v1345 = vand.u32 %v1038, 4294901760
    %v1346 = vsub.f32 %v1038, %v1345
    %v1347 = vand.u32 %v1346, 4294901760
    %v1348 = vsub.f32 %v1346, %v1347
    %v1349 = vand.u32 %v1348, 4294901760
    %1350 = vmatpush1.msra.mxu0 %v1349
    %v1351 = vand.u32 %v1037, 4294901760
    %v1352 = vsub.f32 %v1037, %v1351
    %v1353 = vand.u32 %v1352, 4294901760
    %v1354 = vsub.f32 %v1352, %v1353
    %v1355 = vand.u32 %v1354, 4294901760
    %1356 = vmatprep.subr.mxu0 %v1355
    %v1357 = vand.u32 %v1036, 4294901760
    %v1358 = vsub.f32 %v1036, %v1357
    %v1359 = vand.u32 %v1358, 4294901760
    %v1360 = vsub.f32 %v1358, %v1359
    %v1361 = vand.u32 %v1360, 4294901760
    %1362 = vmatpush1.msra.mxu0 %v1361
    %v1363 = vand.u32 %v1035, 4294901760
    %v1364 = vsub.f32 %v1035, %v1363
    %v1365 = vand.u32 %v1364, 4294901760
    %v1366 = vsub.f32 %v1364, %v1365
    %v1367 = vand.u32 %v1366, 4294901760
    %1368 = vmatprep.subr.mxu0 %v1367
    %v1369 = vand.u32 %v1034, 4294901760
    %v1370 = vsub.f32 %v1034, %v1369
    %v1371 = vand.u32 %v1370, 4294901760
    %v1372 = vsub.f32 %v1370, %v1371
    %v1373 = vand.u32 %v1372, 4294901760
    %1374 = vmatpush1.msra.mxu0 %v1373
    %v1375 = vand.u32 %v1033, 4294901760
    %v1376 = vsub.f32 %v1033, %v1375
    %v1377 = vand.u32 %v1376, 4294901760
    %v1378 = vsub.f32 %v1376, %v1377
    %v1379 = vand.u32 %v1378, 4294901760
    %1380 = vmatprep.subr.mxu0 %v1379
    %v1381 = vand.u32 %v1032, 4294901760
    %v1382 = vsub.f32 %v1032, %v1381
    %v1383 = vand.u32 %v1382, 4294901760
    %v1384 = vsub.f32 %v1382, %v1383
    %v1385 = vand.u32 %v1384, 4294901760
    %1386 = vmatpush1.msra.mxu0 %v1385
    %v1387 = vand.u32 %v1031, 4294901760
    %v1388 = vsub.f32 %v1031, %v1387
    %v1389 = vand.u32 %v1388, 4294901760
    %v1390 = vsub.f32 %v1388, %v1389
    %v1391 = vand.u32 %v1390, 4294901760
    %1392 = vmatprep.subr.mxu0 %v1391
    %v1393 = vand.u32 %v1030, 4294901760
    %v1394 = vsub.f32 %v1030, %v1393
    %v1395 = vand.u32 %v1394, 4294901760
    %v1396 = vsub.f32 %v1394, %v1395
    %v1397 = vand.u32 %v1396, 4294901760
    %1398 = vmatpush1.msra.mxu0 %v1397
    %v1399 = vand.u32 %v1029, 4294901760
    %v1400 = vsub.f32 %v1029, %v1399
    %v1401 = vand.u32 %v1400, 4294901760
    %v1402 = vsub.f32 %v1400, %v1401
    %v1403 = vand.u32 %v1402, 4294901760
    %1404 = vmatprep.subr.mxu0 %v1403
    %v1405 = vand.u32 %v1028, 4294901760
    %v1406 = vsub.f32 %v1028, %v1405
    %v1407 = vand.u32 %v1406, 4294901760
    %v1408 = vsub.f32 %v1406, %v1407
    %v1409 = vand.u32 %v1408, 4294901760
    %1410 = vmatpush1.msra.mxu0 %v1409
    %v1411 = vand.u32 %v1027, 4294901760
    %v1412 = vsub.f32 %v1027, %v1411
    %v1413 = vand.u32 %v1412, 4294901760
    %v1414 = vsub.f32 %v1412, %v1413
    %v1415 = vand.u32 %v1414, 4294901760
    %1416 = vmatprep.subr.mxu0 %v1415
    %v1417 = vand.u32 %v1026, 4294901760
    %v1418 = vsub.f32 %v1026, %v1417
    %v1419 = vand.u32 %v1418, 4294901760
    %v1420 = vsub.f32 %v1418, %v1419
    %v1421 = vand.u32 %v1420, 4294901760
    %1422 = vmatpush1.msra.mxu0 %v1421
    %v1423 = vand.u32 %v1025, 4294901760
    %v1424 = vsub.f32 %v1025, %v1423
    %v1425 = vand.u32 %v1424, 4294901760
    %v1426 = vsub.f32 %v1424, %v1425
    %v1427 = vand.u32 %v1426, 4294901760
    %1428 = vmatprep.subr.mxu0 %v1427
    %v1429 = vand.u32 %v1024, 4294901760
    %v1430 = vsub.f32 %v1024, %v1429
    %v1431 = vand.u32 %v1430, 4294901760
    %v1432 = vsub.f32 %v1430, %v1431
    %v1433 = vand.u32 %v1432, 4294901760
    %1434 = vmatpush1.msra.mxu0 %v1433
    %v1435 = vand.u32 %v1023, 4294901760
    %v1436 = vsub.f32 %v1023, %v1435
    %v1437 = vand.u32 %v1436, 4294901760
    %v1438 = vsub.f32 %v1436, %v1437
    %v1439 = vand.u32 %v1438, 4294901760
    %1440 = vmatprep.subr.mxu0 %v1439
    %v1441 = vand.u32 %v1022, 4294901760
    %v1442 = vsub.f32 %v1022, %v1441
    %v1443 = vand.u32 %v1442, 4294901760
    %v1444 = vsub.f32 %v1442, %v1443
    %v1445 = vand.u32 %v1444, 4294901760
    %1446 = vmatpush1.msra.mxu0 %v1445
    %v1447 = vand.u32 %v1021, 4294901760
    %v1448 = vsub.f32 %v1021, %v1447
    %v1449 = vand.u32 %v1448, 4294901760
    %v1450 = vsub.f32 %v1448, %v1449
    %v1451 = vand.u32 %v1450, 4294901760
    %1452 = vmatprep.subr.mxu0 %v1451
    %v1453 = vand.u32 %v1020, 4294901760
    %v1454 = vsub.f32 %v1020, %v1453
    %v1455 = vand.u32 %v1454, 4294901760
    %v1456 = vsub.f32 %v1454, %v1455
    %v1457 = vand.u32 %v1456, 4294901760
    %1458 = vmatpush1.msra.mxu0 %v1457
    %v1459 = vand.u32 %v1019, 4294901760
    %v1460 = vsub.f32 %v1019, %v1459
    %v1461 = vand.u32 %v1460, 4294901760
    %v1462 = vsub.f32 %v1460, %v1461
    %v1463 = vand.u32 %v1462, 4294901760
    %1464 = vmatprep.subr.mxu0 %v1463
    %v1465 = vand.u32 %v1018, 4294901760
    %v1466 = vsub.f32 %v1018, %v1465
    %v1467 = vand.u32 %v1466, 4294901760
    %v1468 = vsub.f32 %v1466, %v1467
    %v1469 = vand.u32 %v1468, 4294901760
    %1470 = vmatpush1.msra.mxu0 %v1469
    %v1471 = vand.u32 %v1017, 4294901760
    %v1472 = vsub.f32 %v1017, %v1471
    %v1473 = vand.u32 %v1472, 4294901760
    %v1474 = vsub.f32 %v1472, %v1473
    %v1475 = vand.u32 %v1474, 4294901760
    %1476 = vmatprep.subr.mxu0 %v1475
    %v1477 = vand.u32 %v1016, 4294901760
    %v1478 = vsub.f32 %v1016, %v1477
    %v1479 = vand.u32 %v1478, 4294901760
    %v1480 = vsub.f32 %v1478, %v1479
    %v1481 = vand.u32 %v1480, 4294901760
    %1482 = vmatpush1.msra.mxu0 %v1481
    %v1483 = vand.u32 %v1015, 4294901760
    %v1484 = vsub.f32 %v1015, %v1483
    %v1485 = vand.u32 %v1484, 4294901760
    %v1486 = vsub.f32 %v1484, %v1485
    %v1487 = vand.u32 %v1486, 4294901760
    %1488 = vmatprep.subr.mxu0 %v1487
    %v1489 = vand.u32 %v1014, 4294901760
    %v1490 = vsub.f32 %v1014, %v1489
    %v1491 = vand.u32 %v1490, 4294901760
    %v1492 = vsub.f32 %v1490, %v1491
    %v1493 = vand.u32 %v1492, 4294901760
    %1494 = vmatpush1.msra.mxu0 %v1493
    %v1495 = vand.u32 %v1013, 4294901760
    %v1496 = vsub.f32 %v1013, %v1495
    %v1497 = vand.u32 %v1496, 4294901760
    %v1498 = vsub.f32 %v1496, %v1497
    %v1499 = vand.u32 %v1498, 4294901760
    %1500 = vmatprep.subr.mxu0 %v1499
    %v1501 = vand.u32 %v1012, 4294901760
    %v1502 = vsub.f32 %v1012, %v1501
    %v1503 = vand.u32 %v1502, 4294901760
    %v1504 = vsub.f32 %v1502, %v1503
    %v1505 = vand.u32 %v1504, 4294901760
    %1506 = vmatpush1.msra.mxu0 %v1505
    %v1507 = vand.u32 %v1011, 4294901760
    %v1508 = vsub.f32 %v1011, %v1507
    %v1509 = vand.u32 %v1508, 4294901760
    %v1510 = vsub.f32 %v1508, %v1509
    %v1511 = vand.u32 %v1510, 4294901760
    %1512 = vmatprep.subr.mxu0 %v1511
    %v1513 = vand.u32 %v1010, 4294901760
    %v1514 = vsub.f32 %v1010, %v1513
    %v1515 = vand.u32 %v1514, 4294901760
    %v1516 = vsub.f32 %v1514, %v1515
    %v1517 = vand.u32 %v1516, 4294901760
    %1518 = vmatpush1.msra.mxu0 %v1517
    %1519 = vmatprep.subr.mxu0 0.0
    %1520 = vmatpush2.msra.mxu0 0.0
    %1521 = vmatprep.subr.mxu0 0.0
    %1522 = vmatpush2.msra.mxu0 0.0
    %1523 = vmatprep.subr.mxu0 0.0
    %1524 = vmatpush2.msra.mxu0 0.0
    %1525 = vmatprep.subr.mxu0 0.0
    %1526 = vmatpush2.msra.mxu0 0.0
    %1527 = vmatprep.subr.mxu0 0.0
    %1528 = vmatpush2.msra.mxu0 0.0
    %1529 = vmatprep.subr.mxu0 0.0
    %1530 = vmatpush2.msra.mxu0 0.0
    %1531 = vmatprep.subr.mxu0 0.0
    %1532 = vmatpush2.msra.mxu0 0.0
    %1533 = vmatprep.subr.mxu0 0.0
    %1534 = vmatpush2.msra.mxu0 0.0
    %v1535 = vand.u32 %v1057, 4294901760
    %v1536 = vsub.f32 %v1057, %v1535
    %v1537 = vand.u32 %v1536, 4294901760
    %v1538 = vsub.f32 %v1536, %v1537
    %v1539 = vand.u32 %v1538, 4294901760
    %1540 = vmatprep.subr.mxu0 %v1539
    %v1541 = vand.u32 %v1056, 4294901760
    %v1542 = vsub.f32 %v1056, %v1541
    %v1543 = vand.u32 %v1542, 4294901760
    %v1544 = vsub.f32 %v1542, %v1543
    %v1545 = vand.u32 %v1544, 4294901760
    %1546 = vmatpush2.msra.mxu0 %v1545
    %v1547 = vand.u32 %v1055, 4294901760
    %v1548 = vsub.f32 %v1055, %v1547
    %v1549 = vand.u32 %v1548, 4294901760
    %v1550 = vsub.f32 %v1548, %v1549
    %v1551 = vand.u32 %v1550, 4294901760
    %1552 = vmatprep.subr.mxu0 %v1551
    %v1553 = vand.u32 %v1054, 4294901760
    %v1554 = vsub.f32 %v1054, %v1553
    %v1555 = vand.u32 %v1554, 4294901760
    %v1556 = vsub.f32 %v1554, %v1555
    %v1557 = vand.u32 %v1556, 4294901760
    %1558 = vmatpush2.msra.mxu0 %v1557
    %v1559 = vand.u32 %v1053, 4294901760
    %v1560 = vsub.f32 %v1053, %v1559
    %v1561 = vand.u32 %v1560, 4294901760
    %v1562 = vsub.f32 %v1560, %v1561
    %v1563 = vand.u32 %v1562, 4294901760
    %1564 = vmatprep.subr.mxu0 %v1563
    %v1565 = vand.u32 %v1052, 4294901760
    %v1566 = vsub.f32 %v1052, %v1565
    %v1567 = vand.u32 %v1566, 4294901760
    %v1568 = vsub.f32 %v1566, %v1567
    %v1569 = vand.u32 %v1568, 4294901760
    %1570 = vmatpush2.msra.mxu0 %v1569
    %v1571 = vand.u32 %v1051, 4294901760
    %v1572 = vsub.f32 %v1051, %v1571
    %v1573 = vand.u32 %v1572, 4294901760
    %v1574 = vsub.f32 %v1572, %v1573
    %v1575 = vand.u32 %v1574, 4294901760
    %1576 = vmatprep.subr.mxu0 %v1575
    %v1577 = vand.u32 %v1050, 4294901760
    %v1578 = vsub.f32 %v1050, %v1577
    %v1579 = vand.u32 %v1578, 4294901760
    %v1580 = vsub.f32 %v1578, %v1579
    %v1581 = vand.u32 %v1580, 4294901760
    %1582 = vmatpush2.msra.mxu0 %v1581
    %v1583 = vand.u32 %v1049, 4294901760
    %v1584 = vsub.f32 %v1049, %v1583
    %v1585 = vand.u32 %v1584, 4294901760
    %v1586 = vsub.f32 %v1584, %v1585
    %v1587 = vand.u32 %v1586, 4294901760
    %1588 = vmatprep.subr.mxu0 %v1587
    %v1589 = vand.u32 %v1048, 4294901760
    %v1590 = vsub.f32 %v1048, %v1589
    %v1591 = vand.u32 %v1590, 4294901760
    %v1592 = vsub.f32 %v1590, %v1591
    %v1593 = vand.u32 %v1592, 4294901760
    %1594 = vmatpush2.msra.mxu0 %v1593
    %v1595 = vand.u32 %v1047, 4294901760
    %v1596 = vsub.f32 %v1047, %v1595
    %v1597 = vand.u32 %v1596, 4294901760
    %v1598 = vsub.f32 %v1596, %v1597
    %v1599 = vand.u32 %v1598, 4294901760
    %1600 = vmatprep.subr.mxu0 %v1599
    %v1601 = vand.u32 %v1046, 4294901760
    %v1602 = vsub.f32 %v1046, %v1601
    %v1603 = vand.u32 %v1602, 4294901760
    %v1604 = vsub.f32 %v1602, %v1603
    %v1605 = vand.u32 %v1604, 4294901760
    %1606 = vmatpush2.msra.mxu0 %v1605
    %v1607 = vand.u32 %v1045, 4294901760
    %v1608 = vsub.f32 %v1045, %v1607
    %v1609 = vand.u32 %v1608, 4294901760
    %v1610 = vsub.f32 %v1608, %v1609
    %v1611 = vand.u32 %v1610, 4294901760
    %1612 = vmatprep.subr.mxu0 %v1611
    %v1613 = vand.u32 %v1044, 4294901760
    %v1614 = vsub.f32 %v1044, %v1613
    %v1615 = vand.u32 %v1614, 4294901760
    %v1616 = vsub.f32 %v1614, %v1615
    %v1617 = vand.u32 %v1616, 4294901760
    %1618 = vmatpush2.msra.mxu0 %v1617
    %v1619 = vand.u32 %v1043, 4294901760
    %v1620 = vsub.f32 %v1043, %v1619
    %v1621 = vand.u32 %v1620, 4294901760
    %v1622 = vsub.f32 %v1620, %v1621
    %v1623 = vand.u32 %v1622, 4294901760
    %1624 = vmatprep.subr.mxu0 %v1623
    %v1625 = vand.u32 %v1042, 4294901760
    %v1626 = vsub.f32 %v1042, %v1625
    %v1627 = vand.u32 %v1626, 4294901760
    %v1628 = vsub.f32 %v1626, %v1627
    %v1629 = vand.u32 %v1628, 4294901760
    %1630 = vmatpush2.msra.mxu0 %v1629
    %v1631 = vand.u32 %v1070, 4294901760
    %1632 = vmatprep.mubr.f32.mxu0 %v1631
    %v1633 = vand.u32 %v939, 4294901760
    %1634 = vmatmul.mubr.f32.gmra.mxu0 %v1633
    %v1635 = vpop.f32.mrf.mxu0
    %v1636 = vadd.f32 %v1211, %v1635
    %v1637 = vpop.f32.mrf.mxu0
    %v1638 = vadd.f32 %v1213, %v1637
    %v1639 = vand.u32 %v1072, 4294901760
    %1640 = vmatprep.mubr.f32.mxu0 %v1639
    %v1641 = vand.u32 %v940, 4294901760
    %1642 = vmatmul.mubr.f32.gmra.mxu0 %v1641
    %v1643 = vpop.f32.mrf.mxu0
    %v1644 = vadd.f32 %v1227, %v1643
    %v1645 = vpop.f32.mrf.mxu0
    %v1646 = vadd.f32 %v1229, %v1645
    %v1647 = vand.u32 %v1074, 4294901760
    %1648 = vmatprep.mubr.f32.mxu0 %v1647
    %v1649 = vand.u32 %v941, 4294901760
    %1650 = vmatmul.mubr.f32.gmra.mxu0 %v1649
    %v1651 = vpop.f32.mrf.mxu0
    %v1652 = vadd.f32 %v1243, %v1651
    %v1653 = vpop.f32.mrf.mxu0
    %v1654 = vadd.f32 %v1245, %v1653
    %v1655 = vand.u32 %v1076, 4294901760
    %1656 = vmatprep.mubr.f32.mxu0 %v1655
    %v1657 = vand.u32 %v942, 4294901760
    %1658 = vmatmul.mubr.f32.gmra.mxu0 %v1657
    %v1659 = vpop.f32.mrf.mxu0
    %v1660 = vadd.f32 %v1259, %v1659
    %v1661 = vpop.f32.mrf.mxu0
    %v1662 = vadd.f32 %v1261, %v1661
    %v1663 = vand.u32 %v1078, 4294901760
    %1664 = vmatprep.mubr.f32.mxu0 %v1663
    %v1665 = vand.u32 %v990, 4294901760
    %1666 = vmatmul.mubr.f32.gmra.mxu0 %v1665
    %v1667 = vpop.f32.mrf.mxu0
    %v1668 = vadd.f32 %v1275, %v1667
    %v1669 = vpop.f32.mrf.mxu0
    %v1670 = vadd.f32 %v1277, %v1669
    %v1671 = vand.u32 %v1080, 4294901760
    %1672 = vmatprep.mubr.f32.mxu0 %v1671
    %v1673 = vand.u32 %v995, 4294901760
    %1674 = vmatmul.mubr.f32.gmra.mxu0 %v1673
    %v1675 = vpop.f32.mrf.mxu0
    %v1676 = vadd.f32 %v1291, %v1675
    %v1677 = vpop.f32.mrf.mxu0
    %v1678 = vadd.f32 %v1293, %v1677
    %v1679 = vand.u32 %v1082, 4294901760
    %1680 = vmatprep.mubr.f32.mxu0 %v1679
    %v1681 = vand.u32 %v999, 4294901760
    %1682 = vmatmul.mubr.f32.gmra.mxu0 %v1681
    %v1683 = vpop.f32.mrf.mxu0
    %v1684 = vadd.f32 %v1307, %v1683
    %v1685 = vpop.f32.mrf.mxu0
    %v1686 = vadd.f32 %v1309, %v1685
    %v1687 = vand.u32 %v1084, 4294901760
    %1688 = vmatprep.mubr.f32.mxu0 %v1687
    %v1689 = vand.u32 %v1003, 4294901760
    %1690 = vmatmul.mubr.f32.gmra.mxu0 %v1689
    %v1691 = vpop.f32.mrf.mxu0
    %v1692 = vadd.f32 %v1323, %v1691
    %v1693 = vpop.f32.mrf.mxu0
    %v1694 = vadd.f32 %v1325, %v1693
    %1695 = vdwg.mxu0
    %v1696 = vand.u32 %v1041, 4294901760
    %v1697 = vsub.f32 %v1041, %v1696
    %1698 = vmatprep.subr.mxu0 %v1697
    %v1699 = vand.u32 %v1040, 4294901760
    %v1700 = vsub.f32 %v1040, %v1699
    %1701 = vmatpush1.msra.mxu0 %v1700
    %v1702 = vand.u32 %v1039, 4294901760
    %v1703 = vsub.f32 %v1039, %v1702
    %1704 = vmatprep.subr.mxu0 %v1703
    %v1705 = vand.u32 %v1038, 4294901760
    %v1706 = vsub.f32 %v1038, %v1705
    %1707 = vmatpush1.msra.mxu0 %v1706
    %v1708 = vand.u32 %v1037, 4294901760
    %v1709 = vsub.f32 %v1037, %v1708
    %1710 = vmatprep.subr.mxu0 %v1709
    %v1711 = vand.u32 %v1036, 4294901760
    %v1712 = vsub.f32 %v1036, %v1711
    %1713 = vmatpush1.msra.mxu0 %v1712
    %v1714 = vand.u32 %v1035, 4294901760
    %v1715 = vsub.f32 %v1035, %v1714
    %1716 = vmatprep.subr.mxu0 %v1715
    %v1717 = vand.u32 %v1034, 4294901760
    %v1718 = vsub.f32 %v1034, %v1717
    %1719 = vmatpush1.msra.mxu0 %v1718
    %v1720 = vand.u32 %v1033, 4294901760
    %v1721 = vsub.f32 %v1033, %v1720
    %1722 = vmatprep.subr.mxu0 %v1721
    %v1723 = vand.u32 %v1032, 4294901760
    %v1724 = vsub.f32 %v1032, %v1723
    %1725 = vmatpush1.msra.mxu0 %v1724
    %v1726 = vand.u32 %v1031, 4294901760
    %v1727 = vsub.f32 %v1031, %v1726
    %1728 = vmatprep.subr.mxu0 %v1727
    %v1729 = vand.u32 %v1030, 4294901760
    %v1730 = vsub.f32 %v1030, %v1729
    %1731 = vmatpush1.msra.mxu0 %v1730
    %v1732 = vand.u32 %v1029, 4294901760
    %v1733 = vsub.f32 %v1029, %v1732
    %1734 = vmatprep.subr.mxu0 %v1733
    %v1735 = vand.u32 %v1028, 4294901760
    %v1736 = vsub.f32 %v1028, %v1735
    %1737 = vmatpush1.msra.mxu0 %v1736
    %v1738 = vand.u32 %v1027, 4294901760
    %v1739 = vsub.f32 %v1027, %v1738
    %1740 = vmatprep.subr.mxu0 %v1739
    %v1741 = vand.u32 %v1026, 4294901760
    %v1742 = vsub.f32 %v1026, %v1741
    %1743 = vmatpush1.msra.mxu0 %v1742
    %v1744 = vand.u32 %v1025, 4294901760
    %v1745 = vsub.f32 %v1025, %v1744
    %1746 = vmatprep.subr.mxu0 %v1745
    %v1747 = vand.u32 %v1024, 4294901760
    %v1748 = vsub.f32 %v1024, %v1747
    %1749 = vmatpush1.msra.mxu0 %v1748
    %v1750 = vand.u32 %v1023, 4294901760
    %v1751 = vsub.f32 %v1023, %v1750
    %1752 = vmatprep.subr.mxu0 %v1751
    %v1753 = vand.u32 %v1022, 4294901760
    %v1754 = vsub.f32 %v1022, %v1753
    %1755 = vmatpush1.msra.mxu0 %v1754
    %v1756 = vand.u32 %v1021, 4294901760
    %v1757 = vsub.f32 %v1021, %v1756
    %1758 = vmatprep.subr.mxu0 %v1757
    %v1759 = vand.u32 %v1020, 4294901760
    %v1760 = vsub.f32 %v1020, %v1759
    %1761 = vmatpush1.msra.mxu0 %v1760
    %v1762 = vand.u32 %v1019, 4294901760
    %v1763 = vsub.f32 %v1019, %v1762
    %1764 = vmatprep.subr.mxu0 %v1763
    %v1765 = vand.u32 %v1018, 4294901760
    %v1766 = vsub.f32 %v1018, %v1765
    %1767 = vmatpush1.msra.mxu0 %v1766
    %v1768 = vand.u32 %v1017, 4294901760
    %v1769 = vsub.f32 %v1017, %v1768
    %1770 = vmatprep.subr.mxu0 %v1769
    %v1771 = vand.u32 %v1016, 4294901760
    %v1772 = vsub.f32 %v1016, %v1771
    %1773 = vmatpush1.msra.mxu0 %v1772
    %v1774 = vand.u32 %v1015, 4294901760
    %v1775 = vsub.f32 %v1015, %v1774
    %1776 = vmatprep.subr.mxu0 %v1775
    %v1777 = vand.u32 %v1014, 4294901760
    %v1778 = vsub.f32 %v1014, %v1777
    %1779 = vmatpush1.msra.mxu0 %v1778
    %v1780 = vand.u32 %v1013, 4294901760
    %v1781 = vsub.f32 %v1013, %v1780
    %1782 = vmatprep.subr.mxu0 %v1781
    %v1783 = vand.u32 %v1012, 4294901760
    %v1784 = vsub.f32 %v1012, %v1783
    %1785 = vmatpush1.msra.mxu0 %v1784
    %v1786 = vand.u32 %v1011, 4294901760
    %v1787 = vsub.f32 %v1011, %v1786
    %1788 = vmatprep.subr.mxu0 %v1787
    %v1789 = vand.u32 %v1010, 4294901760
    %v1790 = vsub.f32 %v1010, %v1789
    %1791 = vmatpush1.msra.mxu0 %v1790
    %1792 = vmatprep.subr.mxu0 0.0
    %1793 = vmatpush2.msra.mxu0 0.0
    %1794 = vmatprep.subr.mxu0 0.0
    %1795 = vmatpush2.msra.mxu0 0.0
    %1796 = vmatprep.subr.mxu0 0.0
    %1797 = vmatpush2.msra.mxu0 0.0
    %1798 = vmatprep.subr.mxu0 0.0
    %1799 = vmatpush2.msra.mxu0 0.0
    %1800 = vmatprep.subr.mxu0 0.0
    %1801 = vmatpush2.msra.mxu0 0.0
    %1802 = vmatprep.subr.mxu0 0.0
    %1803 = vmatpush2.msra.mxu0 0.0
    %1804 = vmatprep.subr.mxu0 0.0
    %1805 = vmatpush2.msra.mxu0 0.0
    %1806 = vmatprep.subr.mxu0 0.0
    %1807 = vmatpush2.msra.mxu0 0.0
    %v1808 = vand.u32 %v1057, 4294901760
    %v1809 = vsub.f32 %v1057, %v1808
    %1810 = vmatprep.subr.mxu0 %v1809
    %v1811 = vand.u32 %v1056, 4294901760
    %v1812 = vsub.f32 %v1056, %v1811
    %1813 = vmatpush2.msra.mxu0 %v1812
    %v1814 = vand.u32 %v1055, 4294901760
    %v1815 = vsub.f32 %v1055, %v1814
    %1816 = vmatprep.subr.mxu0 %v1815
    %v1817 = vand.u32 %v1054, 4294901760
    %v1818 = vsub.f32 %v1054, %v1817
    %1819 = vmatpush2.msra.mxu0 %v1818
    %v1820 = vand.u32 %v1053, 4294901760
    %v1821 = vsub.f32 %v1053, %v1820
    %1822 = vmatprep.subr.mxu0 %v1821
    %v1823 = vand.u32 %v1052, 4294901760
    %v1824 = vsub.f32 %v1052, %v1823
    %1825 = vmatpush2.msra.mxu0 %v1824
    %v1826 = vand.u32 %v1051, 4294901760
    %v1827 = vsub.f32 %v1051, %v1826
    %1828 = vmatprep.subr.mxu0 %v1827
    %v1829 = vand.u32 %v1050, 4294901760
    %v1830 = vsub.f32 %v1050, %v1829
    %1831 = vmatpush2.msra.mxu0 %v1830
    %v1832 = vand.u32 %v1049, 4294901760
    %v1833 = vsub.f32 %v1049, %v1832
    %1834 = vmatprep.subr.mxu0 %v1833
    %v1835 = vand.u32 %v1048, 4294901760
    %v1836 = vsub.f32 %v1048, %v1835
    %1837 = vmatpush2.msra.mxu0 %v1836
    %v1838 = vand.u32 %v1047, 4294901760
    %v1839 = vsub.f32 %v1047, %v1838
    %1840 = vmatprep.subr.mxu0 %v1839
    %v1841 = vand.u32 %v1046, 4294901760
    %v1842 = vsub.f32 %v1046, %v1841
    %1843 = vmatpush2.msra.mxu0 %v1842
    %v1844 = vand.u32 %v1045, 4294901760
    %v1845 = vsub.f32 %v1045, %v1844
    %1846 = vmatprep.subr.mxu0 %v1845
    %v1847 = vand.u32 %v1044, 4294901760
    %v1848 = vsub.f32 %v1044, %v1847
    %1849 = vmatpush2.msra.mxu0 %v1848
    %v1850 = vand.u32 %v1043, 4294901760
    %v1851 = vsub.f32 %v1043, %v1850
    %1852 = vmatprep.subr.mxu0 %v1851
    %v1853 = vand.u32 %v1042, 4294901760
    %v1854 = vsub.f32 %v1042, %v1853
    %1855 = vmatpush2.msra.mxu0 %v1854
    %v1856 = vand.u32 %v1070, 4294901760
    %v1857 = vsub.f32 %v1070, %v1856
    %1858 = vmatprep.mubr.f32.mxu0 %v1857
    %v1859 = vand.u32 %v939, 4294901760
    %v1860 = vsub.f32 %v939, %v1859
    %1861 = vmatmul.mubr.f32.gmra.mxu0 %v1860
    %v1862 = vpop.f32.mrf.mxu0
    %v1863 = vadd.f32 %v1636, %v1862
    %v1864 = vpop.f32.mrf.mxu0
    %v1865 = vadd.f32 %v1638, %v1864
    %v1866 = vand.u32 %v1072, 4294901760
    %v1867 = vsub.f32 %v1072, %v1866
    %1868 = vmatprep.mubr.f32.mxu0 %v1867
    %v1869 = vand.u32 %v940, 4294901760
    %v1870 = vsub.f32 %v940, %v1869
    %1871 = vmatmul.mubr.f32.gmra.mxu0 %v1870
    %v1872 = vpop.f32.mrf.mxu0
    %v1873 = vadd.f32 %v1644, %v1872
    %v1874 = vpop.f32.mrf.mxu0
    %v1875 = vadd.f32 %v1646, %v1874
    %v1876 = vand.u32 %v1074, 4294901760
    %v1877 = vsub.f32 %v1074, %v1876
    %1878 = vmatprep.mubr.f32.mxu0 %v1877
    %v1879 = vand.u32 %v941, 4294901760
    %v1880 = vsub.f32 %v941, %v1879
    %1881 = vmatmul.mubr.f32.gmra.mxu0 %v1880
    %v1882 = vpop.f32.mrf.mxu0
    %v1883 = vadd.f32 %v1652, %v1882
    %v1884 = vpop.f32.mrf.mxu0
    %v1885 = vadd.f32 %v1654, %v1884
    %v1886 = vand.u32 %v1076, 4294901760
    %v1887 = vsub.f32 %v1076, %v1886
    %1888 = vmatprep.mubr.f32.mxu0 %v1887
    %v1889 = vand.u32 %v942, 4294901760
    %v1890 = vsub.f32 %v942, %v1889
    %1891 = vmatmul.mubr.f32.gmra.mxu0 %v1890
    %v1892 = vpop.f32.mrf.mxu0
    %v1893 = vadd.f32 %v1660, %v1892
    %v1894 = vpop.f32.mrf.mxu0
    %v1895 = vadd.f32 %v1662, %v1894
    %v1896 = vand.u32 %v1078, 4294901760
    %v1897 = vsub.f32 %v1078, %v1896
    %1898 = vmatprep.mubr.f32.mxu0 %v1897
    %v1899 = vand.u32 %v990, 4294901760
    %v1900 = vsub.f32 %v990, %v1899
    %1901 = vmatmul.mubr.f32.gmra.mxu0 %v1900
    %v1902 = vpop.f32.mrf.mxu0
    %v1903 = vadd.f32 %v1668, %v1902
    %v1904 = vpop.f32.mrf.mxu0
    %v1905 = vadd.f32 %v1670, %v1904
    %v1906 = vand.u32 %v1080, 4294901760
    %v1907 = vsub.f32 %v1080, %v1906
    %1908 = vmatprep.mubr.f32.mxu0 %v1907
    %v1909 = vand.u32 %v995, 4294901760
    %v1910 = vsub.f32 %v995, %v1909
    %1911 = vmatmul.mubr.f32.gmra.mxu0 %v1910
    %v1912 = vpop.f32.mrf.mxu0
    %v1913 = vadd.f32 %v1676, %v1912
    %v1914 = vpop.f32.mrf.mxu0
    %v1915 = vadd.f32 %v1678, %v1914
    %v1916 = vand.u32 %v1082, 4294901760
    %v1917 = vsub.f32 %v1082, %v1916
    %1918 = vmatprep.mubr.f32.mxu0 %v1917
    %v1919 = vand.u32 %v999, 4294901760
    %v1920 = vsub.f32 %v999, %v1919
    %1921 = vmatmul.mubr.f32.gmra.mxu0 %v1920
    %v1922 = vpop.f32.mrf.mxu0
    %v1923 = vadd.f32 %v1684, %v1922
    %v1924 = vpop.f32.mrf.mxu0
    %v1925 = vadd.f32 %v1686, %v1924
    %v1926 = vand.u32 %v1084, 4294901760
    %v1927 = vsub.f32 %v1084, %v1926
    %1928 = vmatprep.mubr.f32.mxu0 %v1927
    %v1929 = vand.u32 %v1003, 4294901760
    %v1930 = vsub.f32 %v1003, %v1929
    %1931 = vmatmul.mubr.f32.gmra.mxu0 %v1930
    %v1932 = vpop.f32.mrf.mxu0
    %v1933 = vadd.f32 %v1692, %v1932
    %v1934 = vpop.f32.mrf.mxu0
    %v1935 = vadd.f32 %v1694, %v1934
    %1936 = vdwg.mxu0
    %v1937 = vand.u32 %v1041, 4294901760
    %1938 = vmatprep.subr.mxu0 %v1937
    %v1939 = vand.u32 %v1040, 4294901760
    %1940 = vmatpush1.msra.mxu0 %v1939
    %v1941 = vand.u32 %v1039, 4294901760
    %1942 = vmatprep.subr.mxu0 %v1941
    %v1943 = vand.u32 %v1038, 4294901760
    %1944 = vmatpush1.msra.mxu0 %v1943
    %v1945 = vand.u32 %v1037, 4294901760
    %1946 = vmatprep.subr.mxu0 %v1945
    %v1947 = vand.u32 %v1036, 4294901760
    %1948 = vmatpush1.msra.mxu0 %v1947
    %v1949 = vand.u32 %v1035, 4294901760
    %1950 = vmatprep.subr.mxu0 %v1949
    %v1951 = vand.u32 %v1034, 4294901760
    %1952 = vmatpush1.msra.mxu0 %v1951
    %v1953 = vand.u32 %v1033, 4294901760
    %1954 = vmatprep.subr.mxu0 %v1953
    %v1955 = vand.u32 %v1032, 4294901760
    %1956 = vmatpush1.msra.mxu0 %v1955
    %v1957 = vand.u32 %v1031, 4294901760
    %1958 = vmatprep.subr.mxu0 %v1957
    %v1959 = vand.u32 %v1030, 4294901760
    %1960 = vmatpush1.msra.mxu0 %v1959
    %v1961 = vand.u32 %v1029, 4294901760
    %1962 = vmatprep.subr.mxu0 %v1961
    %v1963 = vand.u32 %v1028, 4294901760
    %1964 = vmatpush1.msra.mxu0 %v1963
    %v1965 = vand.u32 %v1027, 4294901760
    %1966 = vmatprep.subr.mxu0 %v1965
    %v1967 = vand.u32 %v1026, 4294901760
    %1968 = vmatpush1.msra.mxu0 %v1967
    %v1969 = vand.u32 %v1025, 4294901760
    %1970 = vmatprep.subr.mxu0 %v1969
    %v1971 = vand.u32 %v1024, 4294901760
    %1972 = vmatpush1.msra.mxu0 %v1971
    %v1973 = vand.u32 %v1023, 4294901760
    %1974 = vmatprep.subr.mxu0 %v1973
    %v1975 = vand.u32 %v1022, 4294901760
    %1976 = vmatpush1.msra.mxu0 %v1975
    %v1977 = vand.u32 %v1021, 4294901760
    %1978 = vmatprep.subr.mxu0 %v1977
    %v1979 = vand.u32 %v1020, 4294901760
    %1980 = vmatpush1.msra.mxu0 %v1979
    %v1981 = vand.u32 %v1019, 4294901760
    %1982 = vmatprep.subr.mxu0 %v1981
    %v1983 = vand.u32 %v1018, 4294901760
    %1984 = vmatpush1.msra.mxu0 %v1983
    %v1985 = vand.u32 %v1017, 4294901760
    %1986 = vmatprep.subr.mxu0 %v1985
    %v1987 = vand.u32 %v1016, 4294901760
    %1988 = vmatpush1.msra.mxu0 %v1987
    %v1989 = vand.u32 %v1015, 4294901760
    %1990 = vmatprep.subr.mxu0 %v1989
    %v1991 = vand.u32 %v1014, 4294901760
    %1992 = vmatpush1.msra.mxu0 %v1991
    %v1993 = vand.u32 %v1013, 4294901760
    %1994 = vmatprep.subr.mxu0 %v1993
    %v1995 = vand.u32 %v1012, 4294901760
    %1996 = vmatpush1.msra.mxu0 %v1995
    %v1997 = vand.u32 %v1011, 4294901760
    %1998 = vmatprep.subr.mxu0 %v1997
    %v1999 = vand.u32 %v1010, 4294901760
    %2000 = vmatpush1.msra.mxu0 %v1999
    %2001 = vmatprep.subr.mxu0 0.0
    %2002 = vmatpush2.msra.mxu0 0.0
    %2003 = vmatprep.subr.mxu0 0.0
    %2004 = vmatpush2.msra.mxu0 0.0
    %2005 = vmatprep.subr.mxu0 0.0
    %2006 = vmatpush2.msra.mxu0 0.0
    %2007 = vmatprep.subr.mxu0 0.0
    %2008 = vmatpush2.msra.mxu0 0.0
    %2009 = vmatprep.subr.mxu0 0.0
    %2010 = vmatpush2.msra.mxu0 0.0
    %2011 = vmatprep.subr.mxu0 0.0
    %2012 = vmatpush2.msra.mxu0 0.0
    %2013 = vmatprep.subr.mxu0 0.0
    %2014 = vmatpush2.msra.mxu0 0.0
    %2015 = vmatprep.subr.mxu0 0.0
    %2016 = vmatpush2.msra.mxu0 0.0
    %v2017 = vand.u32 %v1057, 4294901760
    %2018 = vmatprep.subr.mxu0 %v2017
    %v2019 = vand.u32 %v1056, 4294901760
    %2020 = vmatpush2.msra.mxu0 %v2019
    %v2021 = vand.u32 %v1055, 4294901760
    %2022 = vmatprep.subr.mxu0 %v2021
    %v2023 = vand.u32 %v1054, 4294901760
    %2024 = vmatpush2.msra.mxu0 %v2023
    %v2025 = vand.u32 %v1053, 4294901760
    %2026 = vmatprep.subr.mxu0 %v2025
    %v2027 = vand.u32 %v1052, 4294901760
    %2028 = vmatpush2.msra.mxu0 %v2027
    %v2029 = vand.u32 %v1051, 4294901760
    %2030 = vmatprep.subr.mxu0 %v2029
    %v2031 = vand.u32 %v1050, 4294901760
    %2032 = vmatpush2.msra.mxu0 %v2031
    %v2033 = vand.u32 %v1049, 4294901760
    %2034 = vmatprep.subr.mxu0 %v2033
    %v2035 = vand.u32 %v1048, 4294901760
    %2036 = vmatpush2.msra.mxu0 %v2035
    %v2037 = vand.u32 %v1047, 4294901760
    %2038 = vmatprep.subr.mxu0 %v2037
    %v2039 = vand.u32 %v1046, 4294901760
    %2040 = vmatpush2.msra.mxu0 %v2039
    %v2041 = vand.u32 %v1045, 4294901760
    %2042 = vmatprep.subr.mxu0 %v2041
    %v2043 = vand.u32 %v1044, 4294901760
    %2044 = vmatpush2.msra.mxu0 %v2043
    %v2045 = vand.u32 %v1043, 4294901760
    %2046 = vmatprep.subr.mxu0 %v2045
    %v2047 = vand.u32 %v1042, 4294901760
    %2048 = vmatpush2.msra.mxu0 %v2047
    %v2049 = vand.u32 %v1070, 4294901760
    %v2050 = vsub.f32 %v1070, %v2049
    %v2051 = vand.u32 %v2050, 4294901760
    %2052 = vmatprep.mubr.f32.mxu0 %v2051
    %v2053 = vand.u32 %v939, 4294901760
    %v2054 = vsub.f32 %v939, %v2053
    %v2055 = vand.u32 %v2054, 4294901760
    %2056 = vmatmul.mubr.f32.gmra.mxu0 %v2055
    %v2057 = vpop.f32.mrf.mxu0
    %v2058 = vadd.f32 %v1863, %v2057
    %v2059 = vpop.f32.mrf.mxu0
    %v2060 = vadd.f32 %v1865, %v2059
    %v2061 = vand.u32 %v1072, 4294901760
    %v2062 = vsub.f32 %v1072, %v2061
    %v2063 = vand.u32 %v2062, 4294901760
    %2064 = vmatprep.mubr.f32.mxu0 %v2063
    %v2065 = vand.u32 %v940, 4294901760
    %v2066 = vsub.f32 %v940, %v2065
    %v2067 = vand.u32 %v2066, 4294901760
    %2068 = vmatmul.mubr.f32.gmra.mxu0 %v2067
    %v2069 = vpop.f32.mrf.mxu0
    %v2070 = vadd.f32 %v1873, %v2069
    %v2071 = vpop.f32.mrf.mxu0
    %v2072 = vadd.f32 %v1875, %v2071
    %v2073 = vand.u32 %v1074, 4294901760
    %v2074 = vsub.f32 %v1074, %v2073
    %v2075 = vand.u32 %v2074, 4294901760
    %2076 = vmatprep.mubr.f32.mxu0 %v2075
    %v2077 = vand.u32 %v941, 4294901760
    %v2078 = vsub.f32 %v941, %v2077
    %v2079 = vand.u32 %v2078, 4294901760
    %2080 = vmatmul.mubr.f32.gmra.mxu0 %v2079
    %v2081 = vpop.f32.mrf.mxu0
    %v2082 = vadd.f32 %v1883, %v2081
    %v2083 = vpop.f32.mrf.mxu0
    %v2084 = vadd.f32 %v1885, %v2083
    %v2085 = vand.u32 %v1076, 4294901760
    %v2086 = vsub.f32 %v1076, %v2085
    %v2087 = vand.u32 %v2086, 4294901760
    %2088 = vmatprep.mubr.f32.mxu0 %v2087
    %v2089 = vand.u32 %v942, 4294901760
    %v2090 = vsub.f32 %v942, %v2089
    %v2091 = vand.u32 %v2090, 4294901760
    %2092 = vmatmul.mubr.f32.gmra.mxu0 %v2091
    %v2093 = vpop.f32.mrf.mxu0
    %v2094 = vadd.f32 %v1893, %v2093
    %v2095 = vpop.f32.mrf.mxu0
    %v2096 = vadd.f32 %v1895, %v2095
    %v2097 = vand.u32 %v1078, 4294901760
    %v2098 = vsub.f32 %v1078, %v2097
    %v2099 = vand.u32 %v2098, 4294901760
    %2100 = vmatprep.mubr.f32.mxu0 %v2099
    %v2101 = vand.u32 %v990, 4294901760
    %v2102 = vsub.f32 %v990, %v2101
    %v2103 = vand.u32 %v2102, 4294901760
    %2104 = vmatmul.mubr.f32.gmra.mxu0 %v2103
    %v2105 = vpop.f32.mrf.mxu0
    %v2106 = vadd.f32 %v1903, %v2105
    %v2107 = vpop.f32.mrf.mxu0
    %v2108 = vadd.f32 %v1905, %v2107
    %v2109 = vand.u32 %v1080, 4294901760
    %v2110 = vsub.f32 %v1080, %v2109
    %v2111 = vand.u32 %v2110, 4294901760
    %2112 = vmatprep.mubr.f32.mxu0 %v2111
    %v2113 = vand.u32 %v995, 4294901760
    %v2114 = vsub.f32 %v995, %v2113
    %v2115 = vand.u32 %v2114, 4294901760
    %2116 = vmatmul.mubr.f32.gmra.mxu0 %v2115
    %v2117 = vpop.f32.mrf.mxu0
    %v2118 = vadd.f32 %v1913, %v2117
    %v2119 = vpop.f32.mrf.mxu0
    %v2120 = vadd.f32 %v1915, %v2119
    %v2121 = vand.u32 %v1082, 4294901760
    %v2122 = vsub.f32 %v1082, %v2121
    %v2123 = vand.u32 %v2122, 4294901760
    %2124 = vmatprep.mubr.f32.mxu0 %v2123
    %v2125 = vand.u32 %v999, 4294901760
    %v2126 = vsub.f32 %v999, %v2125
    %v2127 = vand.u32 %v2126, 4294901760
    %2128 = vmatmul.mubr.f32.gmra.mxu0 %v2127
    %v2129 = vpop.f32.mrf.mxu0
    %v2130 = vadd.f32 %v1923, %v2129
    %v2131 = vpop.f32.mrf.mxu0
    %v2132 = vadd.f32 %v1925, %v2131
    %v2133 = vand.u32 %v1084, 4294901760
    %v2134 = vsub.f32 %v1084, %v2133
    %v2135 = vand.u32 %v2134, 4294901760
    %2136 = vmatprep.mubr.f32.mxu0 %v2135
    %v2137 = vand.u32 %v1003, 4294901760
    %v2138 = vsub.f32 %v1003, %v2137
    %v2139 = vand.u32 %v2138, 4294901760
    %2140 = vmatmul.mubr.f32.gmra.mxu0 %v2139
    %v2141 = vpop.f32.mrf.mxu0
    %v2142 = vadd.f32 %v1933, %v2141
    %v2143 = vpop.f32.mrf.mxu0
    %v2144 = vadd.f32 %v1935, %v2143
    %2145 = vdwg.mxu0
    %v2146 = vand.u32 %v1041, 4294901760
    %v2147 = vsub.f32 %v1041, %v2146
    %v2148 = vand.u32 %v2147, 4294901760
    %2149 = vmatprep.subr.mxu0 %v2148
    %v2150 = vand.u32 %v1040, 4294901760
    %v2151 = vsub.f32 %v1040, %v2150
    %v2152 = vand.u32 %v2151, 4294901760
    %2153 = vmatpush1.msra.mxu0 %v2152
    %v2154 = vand.u32 %v1039, 4294901760
    %v2155 = vsub.f32 %v1039, %v2154
    %v2156 = vand.u32 %v2155, 4294901760
    %2157 = vmatprep.subr.mxu0 %v2156
    %v2158 = vand.u32 %v1038, 4294901760
    %v2159 = vsub.f32 %v1038, %v2158
    %v2160 = vand.u32 %v2159, 4294901760
    %2161 = vmatpush1.msra.mxu0 %v2160
    %v2162 = vand.u32 %v1037, 4294901760
    %v2163 = vsub.f32 %v1037, %v2162
    %v2164 = vand.u32 %v2163, 4294901760
    %2165 = vmatprep.subr.mxu0 %v2164
    %v2166 = vand.u32 %v1036, 4294901760
    %v2167 = vsub.f32 %v1036, %v2166
    %v2168 = vand.u32 %v2167, 4294901760
    %2169 = vmatpush1.msra.mxu0 %v2168
    %v2170 = vand.u32 %v1035, 4294901760
    %v2171 = vsub.f32 %v1035, %v2170
    %v2172 = vand.u32 %v2171, 4294901760
    %2173 = vmatprep.subr.mxu0 %v2172
    %v2174 = vand.u32 %v1034, 4294901760
    %v2175 = vsub.f32 %v1034, %v2174
    %v2176 = vand.u32 %v2175, 4294901760
    %2177 = vmatpush1.msra.mxu0 %v2176
    %v2178 = vand.u32 %v1033, 4294901760
    %v2179 = vsub.f32 %v1033, %v2178
    %v2180 = vand.u32 %v2179, 4294901760
    %2181 = vmatprep.subr.mxu0 %v2180
    %v2182 = vand.u32 %v1032, 4294901760
    %v2183 = vsub.f32 %v1032, %v2182
    %v2184 = vand.u32 %v2183, 4294901760
    %2185 = vmatpush1.msra.mxu0 %v2184
    %v2186 = vand.u32 %v1031, 4294901760
    %v2187 = vsub.f32 %v1031, %v2186
    %v2188 = vand.u32 %v2187, 4294901760
    %2189 = vmatprep.subr.mxu0 %v2188
    %v2190 = vand.u32 %v1030, 4294901760
    %v2191 = vsub.f32 %v1030, %v2190
    %v2192 = vand.u32 %v2191, 4294901760
    %2193 = vmatpush1.msra.mxu0 %v2192
    %v2194 = vand.u32 %v1029, 4294901760
    %v2195 = vsub.f32 %v1029, %v2194
    %v2196 = vand.u32 %v2195, 4294901760
    %2197 = vmatprep.subr.mxu0 %v2196
    %v2198 = vand.u32 %v1028, 4294901760
    %v2199 = vsub.f32 %v1028, %v2198
    %v2200 = vand.u32 %v2199, 4294901760
    %2201 = vmatpush1.msra.mxu0 %v2200
    %v2202 = vand.u32 %v1027, 4294901760
    %v2203 = vsub.f32 %v1027, %v2202
    %v2204 = vand.u32 %v2203, 4294901760
    %2205 = vmatprep.subr.mxu0 %v2204
    %v2206 = vand.u32 %v1026, 4294901760
    %v2207 = vsub.f32 %v1026, %v2206
    %v2208 = vand.u32 %v2207, 4294901760
    %2209 = vmatpush1.msra.mxu0 %v2208
    %v2210 = vand.u32 %v1025, 4294901760
    %v2211 = vsub.f32 %v1025, %v2210
    %v2212 = vand.u32 %v2211, 4294901760
    %2213 = vmatprep.subr.mxu0 %v2212
    %v2214 = vand.u32 %v1024, 4294901760
    %v2215 = vsub.f32 %v1024, %v2214
    %v2216 = vand.u32 %v2215, 4294901760
    %2217 = vmatpush1.msra.mxu0 %v2216
    %v2218 = vand.u32 %v1023, 4294901760
    %v2219 = vsub.f32 %v1023, %v2218
    %v2220 = vand.u32 %v2219, 4294901760
    %2221 = vmatprep.subr.mxu0 %v2220
    %v2222 = vand.u32 %v1022, 4294901760
    %v2223 = vsub.f32 %v1022, %v2222
    %v2224 = vand.u32 %v2223, 4294901760
    %2225 = vmatpush1.msra.mxu0 %v2224
    %v2226 = vand.u32 %v1021, 4294901760
    %v2227 = vsub.f32 %v1021, %v2226
    %v2228 = vand.u32 %v2227, 4294901760
    %2229 = vmatprep.subr.mxu0 %v2228
    %v2230 = vand.u32 %v1020, 4294901760
    %v2231 = vsub.f32 %v1020, %v2230
    %v2232 = vand.u32 %v2231, 4294901760
    %2233 = vmatpush1.msra.mxu0 %v2232
    %v2234 = vand.u32 %v1019, 4294901760
    %v2235 = vsub.f32 %v1019, %v2234
    %v2236 = vand.u32 %v2235, 4294901760
    %2237 = vmatprep.subr.mxu0 %v2236
    %v2238 = vand.u32 %v1018, 4294901760
    %v2239 = vsub.f32 %v1018, %v2238
    %v2240 = vand.u32 %v2239, 4294901760
    %2241 = vmatpush1.msra.mxu0 %v2240
    %v2242 = vand.u32 %v1017, 4294901760
    %v2243 = vsub.f32 %v1017, %v2242
    %v2244 = vand.u32 %v2243, 4294901760
    %2245 = vmatprep.subr.mxu0 %v2244
    %v2246 = vand.u32 %v1016, 4294901760
    %v2247 = vsub.f32 %v1016, %v2246
    %v2248 = vand.u32 %v2247, 4294901760
    %2249 = vmatpush1.msra.mxu0 %v2248
    %v2250 = vand.u32 %v1015, 4294901760
    %v2251 = vsub.f32 %v1015, %v2250
    %v2252 = vand.u32 %v2251, 4294901760
    %2253 = vmatprep.subr.mxu0 %v2252
    %v2254 = vand.u32 %v1014, 4294901760
    %v2255 = vsub.f32 %v1014, %v2254
    %v2256 = vand.u32 %v2255, 4294901760
    %2257 = vmatpush1.msra.mxu0 %v2256
    %v2258 = vand.u32 %v1013, 4294901760
    %v2259 = vsub.f32 %v1013, %v2258
    %v2260 = vand.u32 %v2259, 4294901760
    %2261 = vmatprep.subr.mxu0 %v2260
    %v2262 = vand.u32 %v1012, 4294901760
    %v2263 = vsub.f32 %v1012, %v2262
    %v2264 = vand.u32 %v2263, 4294901760
    %2265 = vmatpush1.msra.mxu0 %v2264
    %v2266 = vand.u32 %v1011, 4294901760
    %v2267 = vsub.f32 %v1011, %v2266
    %v2268 = vand.u32 %v2267, 4294901760
    %2269 = vmatprep.subr.mxu0 %v2268
    %v2270 = vand.u32 %v1010, 4294901760
    %v2271 = vsub.f32 %v1010, %v2270
    %v2272 = vand.u32 %v2271, 4294901760
    %2273 = vmatpush1.msra.mxu0 %v2272
    %2274 = vmatprep.subr.mxu0 0.0
    %2275 = vmatpush2.msra.mxu0 0.0
    %2276 = vmatprep.subr.mxu0 0.0
    %2277 = vmatpush2.msra.mxu0 0.0
    %2278 = vmatprep.subr.mxu0 0.0
    %2279 = vmatpush2.msra.mxu0 0.0
    %2280 = vmatprep.subr.mxu0 0.0
    %2281 = vmatpush2.msra.mxu0 0.0
    %2282 = vmatprep.subr.mxu0 0.0
    %2283 = vmatpush2.msra.mxu0 0.0
    %2284 = vmatprep.subr.mxu0 0.0
    %2285 = vmatpush2.msra.mxu0 0.0
    %2286 = vmatprep.subr.mxu0 0.0
    %2287 = vmatpush2.msra.mxu0 0.0
    %2288 = vmatprep.subr.mxu0 0.0
    %2289 = vmatpush2.msra.mxu0 0.0
    %v2290 = vand.u32 %v1057, 4294901760
    %v2291 = vsub.f32 %v1057, %v2290
    %v2292 = vand.u32 %v2291, 4294901760
    %2293 = vmatprep.subr.mxu0 %v2292
    %v2294 = vand.u32 %v1056, 4294901760
    %v2295 = vsub.f32 %v1056, %v2294
    %v2296 = vand.u32 %v2295, 4294901760
    %2297 = vmatpush2.msra.mxu0 %v2296
    %v2298 = vand.u32 %v1055, 4294901760
    %v2299 = vsub.f32 %v1055, %v2298
    %v2300 = vand.u32 %v2299, 4294901760
    %2301 = vmatprep.subr.mxu0 %v2300
    %v2302 = vand.u32 %v1054, 4294901760
    %v2303 = vsub.f32 %v1054, %v2302
    %v2304 = vand.u32 %v2303, 4294901760
    %2305 = vmatpush2.msra.mxu0 %v2304
    %v2306 = vand.u32 %v1053, 4294901760
    %v2307 = vsub.f32 %v1053, %v2306
    %v2308 = vand.u32 %v2307, 4294901760
    %2309 = vmatprep.subr.mxu0 %v2308
    %v2310 = vand.u32 %v1052, 4294901760
    %v2311 = vsub.f32 %v1052, %v2310
    %v2312 = vand.u32 %v2311, 4294901760
    %2313 = vmatpush2.msra.mxu0 %v2312
    %v2314 = vand.u32 %v1051, 4294901760
    %v2315 = vsub.f32 %v1051, %v2314
    %v2316 = vand.u32 %v2315, 4294901760
    %2317 = vmatprep.subr.mxu0 %v2316
    %v2318 = vand.u32 %v1050, 4294901760
    %v2319 = vsub.f32 %v1050, %v2318
    %v2320 = vand.u32 %v2319, 4294901760
    %2321 = vmatpush2.msra.mxu0 %v2320
    %v2322 = vand.u32 %v1049, 4294901760
    %v2323 = vsub.f32 %v1049, %v2322
    %v2324 = vand.u32 %v2323, 4294901760
    %2325 = vmatprep.subr.mxu0 %v2324
    %v2326 = vand.u32 %v1048, 4294901760
    %v2327 = vsub.f32 %v1048, %v2326
    %v2328 = vand.u32 %v2327, 4294901760
    %2329 = vmatpush2.msra.mxu0 %v2328
    %v2330 = vand.u32 %v1047, 4294901760
    %v2331 = vsub.f32 %v1047, %v2330
    %v2332 = vand.u32 %v2331, 4294901760
    %2333 = vmatprep.subr.mxu0 %v2332
    %v2334 = vand.u32 %v1046, 4294901760
    %v2335 = vsub.f32 %v1046, %v2334
    %v2336 = vand.u32 %v2335, 4294901760
    %2337 = vmatpush2.msra.mxu0 %v2336
    %v2338 = vand.u32 %v1045, 4294901760
    %v2339 = vsub.f32 %v1045, %v2338
    %v2340 = vand.u32 %v2339, 4294901760
    %2341 = vmatprep.subr.mxu0 %v2340
    %v2342 = vand.u32 %v1044, 4294901760
    %v2343 = vsub.f32 %v1044, %v2342
    %v2344 = vand.u32 %v2343, 4294901760
    %2345 = vmatpush2.msra.mxu0 %v2344
    %v2346 = vand.u32 %v1043, 4294901760
    %v2347 = vsub.f32 %v1043, %v2346
    %v2348 = vand.u32 %v2347, 4294901760
    %2349 = vmatprep.subr.mxu0 %v2348
    %v2350 = vand.u32 %v1042, 4294901760
    %v2351 = vsub.f32 %v1042, %v2350
    %v2352 = vand.u32 %v2351, 4294901760
    %2353 = vmatpush2.msra.mxu0 %v2352
    %v2354 = vand.u32 %v1070, 4294901760
    %2355 = vmatprep.mubr.f32.mxu0 %v2354
    %v2356 = vand.u32 %v939, 4294901760
    %2357 = vmatmul.mubr.f32.gmra.mxu0 %v2356
    %v2358 = vpop.f32.mrf.mxu0
    %v2359 = vadd.f32 %v2058, %v2358
    %v2360 = vpop.f32.mrf.mxu0
    %v2361 = vadd.f32 %v2060, %v2360
    %v2362 = vand.u32 %v1072, 4294901760
    %2363 = vmatprep.mubr.f32.mxu0 %v2362
    %v2364 = vand.u32 %v940, 4294901760
    %2365 = vmatmul.mubr.f32.gmra.mxu0 %v2364
    %v2366 = vpop.f32.mrf.mxu0
    %v2367 = vadd.f32 %v2070, %v2366
    %v2368 = vpop.f32.mrf.mxu0
    %v2369 = vadd.f32 %v2072, %v2368
    %v2370 = vand.u32 %v1074, 4294901760
    %2371 = vmatprep.mubr.f32.mxu0 %v2370
    %v2372 = vand.u32 %v941, 4294901760
    %2373 = vmatmul.mubr.f32.gmra.mxu0 %v2372
    %v2374 = vpop.f32.mrf.mxu0
    %v2375 = vadd.f32 %v2082, %v2374
    %v2376 = vpop.f32.mrf.mxu0
    %v2377 = vadd.f32 %v2084, %v2376
    %v2378 = vand.u32 %v1076, 4294901760
    %2379 = vmatprep.mubr.f32.mxu0 %v2378
    %v2380 = vand.u32 %v942, 4294901760
    %2381 = vmatmul.mubr.f32.gmra.mxu0 %v2380
    %v2382 = vpop.f32.mrf.mxu0
    %v2383 = vadd.f32 %v2094, %v2382
    %v2384 = vpop.f32.mrf.mxu0
    %v2385 = vadd.f32 %v2096, %v2384
    %v2386 = vand.u32 %v1078, 4294901760
    %2387 = vmatprep.mubr.f32.mxu0 %v2386
    %v2388 = vand.u32 %v990, 4294901760
    %2389 = vmatmul.mubr.f32.gmra.mxu0 %v2388
    %v2390 = vpop.f32.mrf.mxu0
    %v2391 = vadd.f32 %v2106, %v2390
    %v2392 = vpop.f32.mrf.mxu0
    %v2393 = vadd.f32 %v2108, %v2392
    %v2394 = vand.u32 %v1080, 4294901760
    %2395 = vmatprep.mubr.f32.mxu0 %v2394
    %v2396 = vand.u32 %v995, 4294901760
    %2397 = vmatmul.mubr.f32.gmra.mxu0 %v2396
    %v2398 = vpop.f32.mrf.mxu0
    %v2399 = vadd.f32 %v2118, %v2398
    %v2400 = vpop.f32.mrf.mxu0
    %v2401 = vadd.f32 %v2120, %v2400
    %v2402 = vand.u32 %v1082, 4294901760
    %2403 = vmatprep.mubr.f32.mxu0 %v2402
    %v2404 = vand.u32 %v999, 4294901760
    %2405 = vmatmul.mubr.f32.gmra.mxu0 %v2404
    %v2406 = vpop.f32.mrf.mxu0
    %v2407 = vadd.f32 %v2130, %v2406
    %v2408 = vpop.f32.mrf.mxu0
    %v2409 = vadd.f32 %v2132, %v2408
    %v2410 = vand.u32 %v1084, 4294901760
    %2411 = vmatprep.mubr.f32.mxu0 %v2410
    %v2412 = vand.u32 %v1003, 4294901760
    %2413 = vmatmul.mubr.f32.gmra.mxu0 %v2412
    %v2414 = vpop.f32.mrf.mxu0
    %v2415 = vadd.f32 %v2142, %v2414
    %v2416 = vpop.f32.mrf.mxu0
    %v2417 = vadd.f32 %v2144, %v2416
    %2418 = vdwg.mxu0
    %v2419 = vand.u32 %v1041, 4294901760
    %2420 = vmatprep.subr.mxu0 %v2419
    %v2421 = vand.u32 %v1040, 4294901760
    %2422 = vmatpush1.msra.mxu0 %v2421
    %v2423 = vand.u32 %v1039, 4294901760
    %2424 = vmatprep.subr.mxu0 %v2423
    %v2425 = vand.u32 %v1038, 4294901760
    %2426 = vmatpush1.msra.mxu0 %v2425
    %v2427 = vand.u32 %v1037, 4294901760
    %2428 = vmatprep.subr.mxu0 %v2427
    %v2429 = vand.u32 %v1036, 4294901760
    %2430 = vmatpush1.msra.mxu0 %v2429
    %v2431 = vand.u32 %v1035, 4294901760
    %2432 = vmatprep.subr.mxu0 %v2431
    %v2433 = vand.u32 %v1034, 4294901760
    %2434 = vmatpush1.msra.mxu0 %v2433
    %v2435 = vand.u32 %v1033, 4294901760
    %2436 = vmatprep.subr.mxu0 %v2435
    %v2437 = vand.u32 %v1032, 4294901760
    %2438 = vmatpush1.msra.mxu0 %v2437
    %v2439 = vand.u32 %v1031, 4294901760
    %2440 = vmatprep.subr.mxu0 %v2439
    %v2441 = vand.u32 %v1030, 4294901760
    %2442 = vmatpush1.msra.mxu0 %v2441
    %v2443 = vand.u32 %v1029, 4294901760
    %2444 = vmatprep.subr.mxu0 %v2443
    %v2445 = vand.u32 %v1028, 4294901760
    %2446 = vmatpush1.msra.mxu0 %v2445
    %v2447 = vand.u32 %v1027, 4294901760
    %2448 = vmatprep.subr.mxu0 %v2447
    %v2449 = vand.u32 %v1026, 4294901760
    %2450 = vmatpush1.msra.mxu0 %v2449
    %v2451 = vand.u32 %v1025, 4294901760
    %2452 = vmatprep.subr.mxu0 %v2451
    %v2453 = vand.u32 %v1024, 4294901760
    %2454 = vmatpush1.msra.mxu0 %v2453
    %v2455 = vand.u32 %v1023, 4294901760
    %2456 = vmatprep.subr.mxu0 %v2455
    %v2457 = vand.u32 %v1022, 4294901760
    %2458 = vmatpush1.msra.mxu0 %v2457
    %v2459 = vand.u32 %v1021, 4294901760
    %2460 = vmatprep.subr.mxu0 %v2459
    %v2461 = vand.u32 %v1020, 4294901760
    %2462 = vmatpush1.msra.mxu0 %v2461
    %v2463 = vand.u32 %v1019, 4294901760
    %2464 = vmatprep.subr.mxu0 %v2463
    %v2465 = vand.u32 %v1018, 4294901760
    %2466 = vmatpush1.msra.mxu0 %v2465
    %v2467 = vand.u32 %v1017, 4294901760
    %2468 = vmatprep.subr.mxu0 %v2467
    %v2469 = vand.u32 %v1016, 4294901760
    %2470 = vmatpush1.msra.mxu0 %v2469
    %v2471 = vand.u32 %v1015, 4294901760
    %2472 = vmatprep.subr.mxu0 %v2471
    %v2473 = vand.u32 %v1014, 4294901760
    %2474 = vmatpush1.msra.mxu0 %v2473
    %v2475 = vand.u32 %v1013, 4294901760
    %2476 = vmatprep.subr.mxu0 %v2475
    %v2477 = vand.u32 %v1012, 4294901760
    %2478 = vmatpush1.msra.mxu0 %v2477
    %v2479 = vand.u32 %v1011, 4294901760
    %2480 = vmatprep.subr.mxu0 %v2479
    %v2481 = vand.u32 %v1010, 4294901760
    %2482 = vmatpush1.msra.mxu0 %v2481
    %2483 = vmatprep.subr.mxu0 0.0
    %2484 = vmatpush2.msra.mxu0 0.0
    %2485 = vmatprep.subr.mxu0 0.0
    %2486 = vmatpush2.msra.mxu0 0.0
    %2487 = vmatprep.subr.mxu0 0.0
    %2488 = vmatpush2.msra.mxu0 0.0
    %2489 = vmatprep.subr.mxu0 0.0
    %2490 = vmatpush2.msra.mxu0 0.0
    %2491 = vmatprep.subr.mxu0 0.0
    %2492 = vmatpush2.msra.mxu0 0.0
    %2493 = vmatprep.subr.mxu0 0.0
    %2494 = vmatpush2.msra.mxu0 0.0
    %2495 = vmatprep.subr.mxu0 0.0
    %2496 = vmatpush2.msra.mxu0 0.0
    %2497 = vmatprep.subr.mxu0 0.0
    %2498 = vmatpush2.msra.mxu0 0.0
    %v2499 = vand.u32 %v1057, 4294901760
    %2500 = vmatprep.subr.mxu0 %v2499
    %v2501 = vand.u32 %v1056, 4294901760
    %2502 = vmatpush2.msra.mxu0 %v2501
    %v2503 = vand.u32 %v1055, 4294901760
    %2504 = vmatprep.subr.mxu0 %v2503
    %v2505 = vand.u32 %v1054, 4294901760
    %2506 = vmatpush2.msra.mxu0 %v2505
    %v2507 = vand.u32 %v1053, 4294901760
    %2508 = vmatprep.subr.mxu0 %v2507
    %v2509 = vand.u32 %v1052, 4294901760
    %2510 = vmatpush2.msra.mxu0 %v2509
    %v2511 = vand.u32 %v1051, 4294901760
    %2512 = vmatprep.subr.mxu0 %v2511
    %v2513 = vand.u32 %v1050, 4294901760
    %2514 = vmatpush2.msra.mxu0 %v2513
    %v2515 = vand.u32 %v1049, 4294901760
    %2516 = vmatprep.subr.mxu0 %v2515
    %v2517 = vand.u32 %v1048, 4294901760
    %2518 = vmatpush2.msra.mxu0 %v2517
    %v2519 = vand.u32 %v1047, 4294901760
    %2520 = vmatprep.subr.mxu0 %v2519
    %v2521 = vand.u32 %v1046, 4294901760
    %2522 = vmatpush2.msra.mxu0 %v2521
    %v2523 = vand.u32 %v1045, 4294901760
    %2524 = vmatprep.subr.mxu0 %v2523
    %v2525 = vand.u32 %v1044, 4294901760
    %2526 = vmatpush2.msra.mxu0 %v2525
    %v2527 = vand.u32 %v1043, 4294901760
    %2528 = vmatprep.subr.mxu0 %v2527
    %v2529 = vand.u32 %v1042, 4294901760
    %2530 = vmatpush2.msra.mxu0 %v2529
    %v2531 = vand.u32 %v1070, 4294901760
    %2532 = vmatprep.mubr.f32.mxu0 %v2531
    %v2533 = vand.u32 %v939, 4294901760
    %2534 = vmatmul.mubr.f32.gmra.mxu0 %v2533
    %v2535 = vpop.f32.mrf.mxu0
    %v2536 = vadd.f32 %v2359, %v2535
    %v2537 = vpop.f32.mrf.mxu0
    %v2538 = vadd.f32 %v2361, %v2537
    %v2539 = vand.u32 %v1072, 4294901760
    %2540 = vmatprep.mubr.f32.mxu0 %v2539
    %v2541 = vand.u32 %v940, 4294901760
    %2542 = vmatmul.mubr.f32.gmra.mxu0 %v2541
    %v2543 = vpop.f32.mrf.mxu0
    %v2544 = vadd.f32 %v2367, %v2543
    %v2545 = vpop.f32.mrf.mxu0
    %v2546 = vadd.f32 %v2369, %v2545
    %v2547 = vand.u32 %v1074, 4294901760
    %2548 = vmatprep.mubr.f32.mxu0 %v2547
    %v2549 = vand.u32 %v941, 4294901760
    %2550 = vmatmul.mubr.f32.gmra.mxu0 %v2549
    %v2551 = vpop.f32.mrf.mxu0
    %v2552 = vadd.f32 %v2375, %v2551
    %v2553 = vpop.f32.mrf.mxu0
    %v2554 = vadd.f32 %v2377, %v2553
    %v2555 = vand.u32 %v1076, 4294901760
    %2556 = vmatprep.mubr.f32.mxu0 %v2555
    %v2557 = vand.u32 %v942, 4294901760
    %2558 = vmatmul.mubr.f32.gmra.mxu0 %v2557
    %v2559 = vpop.f32.mrf.mxu0
    %v2560 = vadd.f32 %v2383, %v2559
    %v2561 = vpop.f32.mrf.mxu0
    %v2562 = vadd.f32 %v2385, %v2561
    %v2563 = vand.u32 %v1078, 4294901760
    %2564 = vmatprep.mubr.f32.mxu0 %v2563
    %v2565 = vand.u32 %v990, 4294901760
    %2566 = vmatmul.mubr.f32.gmra.mxu0 %v2565
    %v2567 = vpop.f32.mrf.mxu0
    %v2568 = vadd.f32 %v2391, %v2567
    %v2569 = vpop.f32.mrf.mxu0
    %v2570 = vadd.f32 %v2393, %v2569
    %v2571 = vand.u32 %v1080, 4294901760
    %2572 = vmatprep.mubr.f32.mxu0 %v2571
    %v2573 = vand.u32 %v995, 4294901760
    %2574 = vmatmul.mubr.f32.gmra.mxu0 %v2573
    %v2575 = vpop.f32.mrf.mxu0
    %v2576 = vadd.f32 %v2399, %v2575
    %v2577 = vpop.f32.mrf.mxu0
    %v2578 = vadd.f32 %v2401, %v2577
    %v2579 = vand.u32 %v1082, 4294901760
    %2580 = vmatprep.mubr.f32.mxu0 %v2579
    %v2581 = vand.u32 %v999, 4294901760
    %2582 = vmatmul.mubr.f32.gmra.mxu0 %v2581
    %v2583 = vpop.f32.mrf.mxu0
    %v2584 = vadd.f32 %v2407, %v2583
    %v2585 = vpop.f32.mrf.mxu0
    %v2586 = vadd.f32 %v2409, %v2585
    %v2587 = vand.u32 %v1084, 4294901760
    %2588 = vmatprep.mubr.f32.mxu0 %v2587
    %v2589 = vand.u32 %v1003, 4294901760
    %2590 = vmatmul.mubr.f32.gmra.mxu0 %v2589
    %v2591 = vpop.f32.mrf.mxu0
    %v2592 = vadd.f32 %v2415, %v2591
    %v2593 = vpop.f32.mrf.mxu0
    %v2594 = vadd.f32 %v2417, %v2593
    %2595 = vdwg.mxu0
    %2596 = vst [vmem:[%s4] sm:$0xff] %v2536
    %2597 = vst.msk [vmem:[%s4 + $0x8] sm:$0xff] %vm938, %v2538
    %2598 = vst [vmem:[%s4 + $0x10] sm:$0xff] %v2544
    %2599 = vst.msk [vmem:[%s4 + $0x18] sm:$0xff] %vm938, %v2546
    %2600 = vst [vmem:[%s4 + $0x20] sm:$0xff] %v2552
    %2601 = vst.msk [vmem:[%s4 + $0x28] sm:$0xff] %vm938, %v2554
    %2602 = vst [vmem:[%s4 + $0x30] sm:$0xff] %v2560
    %2603 = vst.msk [vmem:[%s4 + $0x38] sm:$0xff] %vm938, %v2562
    %2604 = vst [vmem:[%s4 + $0x40] sm:$0xff] %v2568
    %2605 = vst.msk [vmem:[%s4 + $0x48] sm:$0xff] %vm938, %v2570
    %2606 = vst [vmem:[%s4 + $0x50] sm:$0xff] %v2576
    %2607 = vst.msk [vmem:[%s4 + $0x58] sm:$0xff] %vm938, %v2578
    %2608 = vst [vmem:[%s4 + $0x60] sm:$0xff] %v2584
    %2609 = vst.msk [vmem:[%s4 + $0x68] sm:$0xff] %vm938, %v2586
    %2610 = vst [vmem:[%s4 + $0x70] sm:$0xff] %v2592
    %2611 = vst.msk [vmem:[%s4 + $0x78] sm:$0xff] %vm938, %v2594
    // Predicated region
    $region22: #{apply.1} parent=1 // pred_check
      _
    $region23: #{apply.1} parent=1 // pred_check_branch
      %2613 = sbr.rel (0) target = $region25
    $region24: #{apply.1} parent=1 // pred_region
      _
    $region25: #{apply.1} parent=1 // pred_fallthru
      _
    // Predicated region
    $region26: #{apply.1} parent=1 // pred_check
      _
    $region27: #{apply.1} parent=1 // pred_check_branch
      %2615 = sbr.rel (0) target = $region29
    $region28: #{apply.1} parent=1 // pred_region
      _
    $region29: #{apply.1} parent=1 // pred_fallthru
      _
    %2616 = vsyncpa [#allocation3], 1

</llo_original>
